<compile_context>
chip_gen: v6e
topology: v6e:2x2x1
jax: 0.10.0
libtpu: 0.0.40
codegen_flags: <defaults>
</compile_context>

<pallas_src>
import functools

import jax
import jax.numpy as jnp
from jax.experimental import pallas as pl
from jax.experimental.pallas import tpu as pltpu

# Dynamics constants (match nn.Module __init__ defaults)
B_CONST = 0.1
K_CONST = 5.0
C_CONST = 1.0
D_CONST = 5.0
E_CONST = 0.9
H_CONST = 0.1

# Series terms for 1/(D+E*xi+H*xj).  Valid while |H*x| < D + E*x (true for the
# mutualistic dynamics' natural state range x in [0, K]); 6 terms -> <=1e-6 rel.
DEFAULT_N_TERMS = 6


def _mutual_dynamics_kernel(mask_ref, fetch_ref, xi_ref, a_ref, xj_ref, o_ref,
                            acc_ref, *, n_terms):
    """Grid step (i, j): accumulate A_block @ x_j^{k+1} into acc_ref[k].

    mask_ref  : (gm*gn,) int32 SMEM -- nonzero iff A block (i, j) has any entry
    fetch_ref : (gm*gn,) int32 SMEM -- column block actually DMA'd this step
    xi_ref    : (tm, d)  rows of x owned by this row tile ("i" side)
    a_ref     : (tm, tn) A block for (i-tile, fetched j-tile)
    xj_ref    : (tn, d)  rows of x for the fetched j-tile ("j" side)
    o_ref     : (tm, d)  output rows (written once, at the last j step)
    acc_ref   : (n_terms, tm, d) f32 accumulators of sum_j A[i,j] * x[j]^{k+1}
    """
    del fetch_ref  # only used by the index_maps
    i = pl.program_id(0)
    j = pl.program_id(1)
    gn = pl.num_programs(1)

    @pl.when(j == 0)
    def _init():
        acc_ref[...] = jnp.zeros_like(acc_ref)

    @pl.when(mask_ref[i * gn + j] != 0)
    def _accumulate():
        a = a_ref[...].astype(jnp.float32)         # (tm, tn)
        xj = xj_ref[...].astype(jnp.float32)       # (tn, d)
        xp = xj                                    # x_j^{k+1}, starting at k=0
        # Short, fully-unrolled loop (n_terms ~ 6): one f32 MXU matmul + one
        # accumulator add per term; all xi-dependent scaling happens at finalize.
        for k in range(n_terms):
            acc_ref[k] += jnp.dot(a, xp, preferred_element_type=jnp.float32)
            if k + 1 < n_terms:
                xp = xp * xj

    @pl.when(j == gn - 1)
    def _finalize():
        xi = xi_ref[...].astype(jnp.float32)       # (tm, d)
        # Self dynamics: b + x*(1 - x/k)*(x/c - 1)
        f = B_CONST + xi * (1.0 - xi / K_CONST) * (xi / C_CONST - 1.0)
        # Exact divide, once per row tile (dominant k=0 coefficient must be
        # accurate; an approx reciprocal would blow the 1e-4 budget).
        inv_den = 1.0 / (D_CONST + E_CONST * xi)   # (tm, d)
        neg_h_inv = (-H_CONST) * inv_den
        # Horner evaluation of sum_k (-H)^k * inv_den^{k+1} * acc[k]:
        #   inv_den * (acc0 + (-H*inv_den)*(acc1 + (-H*inv_den)*(acc2 + ...)))
        poly = acc_ref[n_terms - 1]
        for k in range(n_terms - 2, -1, -1):
            poly = acc_ref[k] + neg_h_inv * poly
        o_ref[...] = (f + xi * (inv_den * poly)).astype(o_ref.dtype)


def _choose_tiles(n, pref=128):
    """Pick (tm, tn): largest multiple of 8 dividing n, capped at `pref`.

    The row tile tm is additionally shrunk so the "parallel" grid axis has at
    least 2 tiles, keeping both v7x TensorCores busy (no-op on 1-TC v5e/v6e).
    """
    cands = [t for t in range(8, min(pref, n) + 1, 8) if n % t == 0]
    if not cands:
        return n, n          # tiny / oddly sized n: single full-extent blocks
    tn = cands[-1]
    tm = cands[-1]
    if n // tm < 2:
        two_plus = [t for t in cands if n // t >= 2]
        if two_plus:
            tm = two_plus[-1]
    return tm, tn


def precompute_adjacency_blocks(A, tm, tn):
    """Block-occupancy tables for A.  Compute ONCE per adjacency matrix.

    A is constant across ODE steps (only x changes), so this O(n^2) pass must
    not be redone on every RHS evaluation -- pass the result to mutual_dynamics.

    Returns (mask, fetch), both 1-D (gm*gn,) int32 (1-D avoids 2-D SMEM lane
    padding at large graph sizes):
      mask[i*gn + j]  : 1 iff block (i, j) of A has any nonzero entry
      fetch[i*gn + j] : column-block index to DMA at step (i, j) -- the current
                        j if the block is nonzero, else the most recent nonzero
                        block in row i, so consecutive identical indices let
                        Pallas elide the copy for dead blocks.
    """
    n = A.shape[0]
    gm, gn = n // tm, n // tn
    occ = jnp.abs(A).reshape(gm, tm, gn, tn).sum(axis=(1, 3)) > 0      # (gm, gn)
    mask = occ.astype(jnp.int32)
    js = jnp.arange(gn, dtype=jnp.int32)
    fetch = jax.lax.cummax(jnp.where(occ, js[None, :], 0), axis=1).astype(jnp.int32)
    return mask.reshape(-1), fetch.reshape(-1)


def mutual_dynamics(t, x, A, blocks=None, *, tm=None, tn=None,
                    n_terms=DEFAULT_N_TERMS):
    """dx/dt for MutualDynamics (dense A, d > 1 path). `t` unused (autonomous).

    The coupling denominator is evaluated via a truncated series that requires
    H*max(x) < D + E*min(x); for the mutualistic dynamics' state range
    x in [0, K=5] the ratio is <= 0.1 and `n_terms`=6 gives <=1e-6 rel. error.
    """
    del t
    n, d = x.shape
    assert A.shape == (n, n)
    if tm is None or tn is None:
        tm_d, tn_d = _choose_tiles(n)
        tm = tm_d if tm is None else tm
        tn = tn_d if tn is None else tn
    assert n % tm == 0 and n % tn == 0
    gm, gn = n // tm, n // tn

    if blocks is None:
        blocks = precompute_adjacency_blocks(A, tm, tn)
    block_mask, block_fetch = blocks
    assert block_mask.shape == (gm * gn,) and block_fetch.shape == (gm * gn,)

    # Index maps: prefetched SMEM refs arrive as positional trailing args.
    def xi_map(i, j, mask, fetch):
        return (i, 0)

    def a_map(i, j, mask, fetch):
        return (i, fetch[i * gn + j])

    def xj_map(i, j, mask, fetch):
        return (fetch[i * gn + j], 0)

    def o_map(i, j, mask, fetch):
        return (i, 0)

    kernel = functools.partial(_mutual_dynamics_kernel, n_terms=n_terms)

    return pl.pallas_call(
        kernel,
        out_shape=jax.ShapeDtypeStruct((n, d), x.dtype),
        grid_spec=pltpu.PrefetchScalarGridSpec(
            num_scalar_prefetch=2,
            grid=(gm, gn),
            in_specs=[
                pl.BlockSpec((tm, d), xi_map),    # x rows ("i" side)
                pl.BlockSpec((tm, tn), a_map),    # A block (DMA skipped if masked)
                pl.BlockSpec((tn, d), xj_map),    # x rows ("j" side)
            ],
            out_specs=pl.BlockSpec((tm, d), o_map),
            scratch_shapes=[pltpu.VMEM((n_terms, tm, d), jnp.float32)],
        ),
        compiler_params=pltpu.CompilerParams(
            dimension_semantics=("parallel", "arbitrary")),
    )(block_mask, block_fetch, x, A, x)


def mutual_dynamics_ref(x, A):
    """Pure-JAX reference mirroring the PyTorch dense nonzero()-loop path."""
    f = B_CONST + x * (1.0 - x / K_CONST) * (x / C_CONST - 1.0)
    xi = x[:, None, :]
    xj = x[None, :, :]
    inter = jnp.sum(
        A[:, :, None] * xi * xj / (D_CONST + E_CONST * xi + H_CONST * xj),
        axis=1,
    )
    return f + inter


if __name__ == "__main__":
    key = jax.random.PRNGKey(0)
    kx, ka = jax.random.split(key)

    n, d = 256, 128  # n nodes, d-dimensional state per node (exercises a 2x2 grid)
    # Positive states keep the dynamics well-conditioned (denominator >= D = 5)
    # and inside the series' convergence region.
    x = jax.random.uniform(kx, (n, d), dtype=jnp.float32, minval=0.1, maxval=2.0)
    # Deterministic dense 0/1 adjacency matrix (synthetic, not a checkpoint);
    # zero out one 128x128 block so the mask/DMA-skip path is exercised too.
    A = (jax.random.uniform(ka, (n, n), dtype=jnp.float32) > 0.5).astype(jnp.float32)
    A = A.at[:128, 128:].set(0.0)

    # A is constant across ODE steps: build the block occupancy tables once and
    # reuse them for every RHS evaluation.
    tm, tn = _choose_tiles(n)
    blocks = precompute_adjacency_blocks(A, tm, tn)

    out = mutual_dynamics(0.0, x, A, blocks=blocks, tm=tm, tn=tn)
    out = jax.block_until_ready(out)

    ref = mutual_dynamics_ref(x, A)
    assert out.shape == (n, d) and out.dtype == jnp.float32
    assert jnp.allclose(out, ref, rtol=1e-4, atol=1e-4), "mismatch vs JAX reference"

    # TODO(synk): the d==1 special case (diag(A @ M) with swapped e/h roles in
    # the denominator) and the torch.sparse COO value-loop are not implemented;
    # this kernel covers the dense-A, d>1 forward path (block-level sparsity is
    # exploited via the prefetched mask / fetch-index tables).
    print("KERNEL_OK")
</pallas_src>

<mosaic_0001>
module attributes {stable_mosaic.version = 11 : i64} {
  func.func @_mutual_dynamics_kernel(%arg0: i32, %arg1: i32, %arg2: memref<4xi32, #tpu.memory_space<smem>>, %arg3: memref<4xi32, #tpu.memory_space<smem>>, %arg4: memref<128x128xf32, #tpu.memory_space<vmem>>, %arg5: memref<128x128xf32, #tpu.memory_space<vmem>>, %arg6: memref<128x128xf32, #tpu.memory_space<vmem>>, %arg7: memref<128x128xf32, #tpu.memory_space<vmem>>, %arg8: memref<6x128x128xf32, #tpu.memory_space<vmem>>) attributes {dimension_semantics = [#tpu.dimension_semantics<parallel>, #tpu.dimension_semantics<arbitrary>], iteration_bounds = array<i64: 2, 2>, scalar_prefetch = 2 : i64, scratch_operands = 1 : i64, tpu.core_type = #tpu.core_type<tc>, window_params = [{transform_indices = @transform_0, window_bounds = array<i64: 128, 128>}, {transform_indices = @transform_1, window_bounds = array<i64: 128, 128>}, {transform_indices = @transform_2, window_bounds = array<i64: 128, 128>}, {transform_indices = @transform_3, window_bounds = array<i64: 128, 128>}]} {
    %c0_i32 = arith.constant 0 : i32
    %0 = arith.cmpi eq, %arg1, %c0_i32 : i32
    %1 = arith.extui %0 : i1 to i32
    %c0_i32_0 = arith.constant 0 : i32
    %2 = arith.cmpi ne, %1, %c0_i32_0 : i32
    scf.if %2 {
      %cst = arith.constant 0.000000e+00 : f32
      %13 = vector.broadcast %cst : f32 to vector<6x128x128xf32>
      %c0 = arith.constant 0 : index
      %c0_4 = arith.constant 0 : index
      %c0_5 = arith.constant 0 : index
      %14 = vector.load %arg8[%c0, %c0_4, %c0_5] : memref<6x128x128xf32, #tpu.memory_space<vmem>>, vector<6x128x128xf32>
      tpu.vector_store %arg8[%c0, %c0_4, %c0_5], %13 {strides = array<i32>} : memref<6x128x128xf32, #tpu.memory_space<vmem>>, vector<6x128x128xf32>,
    } else {
    }
    %c2_i32 = arith.constant 2 : i32
    %3 = arith.muli %arg0, %c2_i32 : i32
    %4 = arith.addi %3, %arg1 : i32
    %5 = arith.index_cast %4 : i32 to index
    %6 = memref.load %arg2[%5] : memref<4xi32, #tpu.memory_space<smem>>
    %c0_i32_1 = arith.constant 0 : i32
    %7 = arith.cmpi ne, %6, %c0_i32_1 : i32
    %8 = arith.extui %7 : i1 to i32
    %c0_i32_2 = arith.constant 0 : i32
    %9 = arith.cmpi ne, %8, %c0_i32_2 : i32
    scf.if %9 {
      %c0 = arith.constant 0 : index
      %c0_4 = arith.constant 0 : index
      %13 = vector.load %arg5[%c0, %c0_4] : memref<128x128xf32, #tpu.memory_space<vmem>>, vector<128x128xf32>
      %c0_5 = arith.constant 0 : index
      %c0_6 = arith.constant 0 : index
      %14 = vector.load %arg6[%c0_5, %c0_6] : memref<128x128xf32, #tpu.memory_space<vmem>>, vector<128x128xf32>
      %c0_7 = arith.constant 0 : index
      %c0_8 = arith.constant 0 : index
      %c0_9 = arith.constant 0 : index
      %15 = vector.load %arg8[%c0_7, %c0_8, %c0_9] : memref<6x128x128xf32, #tpu.memory_space<vmem>>, vector<1x128x128xf32>
      %16 = vector.shape_cast %15 : vector<1x128x128xf32> to vector<128x128xf32>
      %cst = arith.constant dense<0.000000e+00> : vector<128x128xf32>
      %17 = tpu.matmul %13, %14, %cst {dimension_numbers = #tpu.dot_dimension_numbers<[1], [0], [0], [1], [0, 0, 1, 1], [], []>} : vector<128x128xf32>, vector<128x128xf32>, vector<128x128xf32> -> vector<128x128xf32>
      %18 = arith.addf %16, %17 : vector<128x128xf32>
      %c0_10 = arith.constant 0 : index
      %c0_11 = arith.constant 0 : index
      %c0_12 = arith.constant 0 : index
      %19 = vector.load %arg8[%c0_10, %c0_11, %c0_12] : memref<6x128x128xf32, #tpu.memory_space<vmem>>, vector<1x128x128xf32>
      %20 = vector.shape_cast %19 : vector<1x128x128xf32> to vector<128x128xf32>
      %21 = vector.shape_cast %18 : vector<128x128xf32> to vector<1x128x128xf32>
      tpu.vector_store %arg8[%c0_10, %c0_11, %c0_12], %21 {strides = array<i32>} : memref<6x128x128xf32, #tpu.memory_space<vmem>>, vector<1x128x128xf32>,
      %22 = arith.mulf %14, %14 : vector<128x128xf32>
      %c1 = arith.constant 1 : index
      %c0_13 = arith.constant 0 : index
      %c0_14 = arith.constant 0 : index
      %23 = vector.load %arg8[%c1, %c0_13, %c0_14] : memref<6x128x128xf32, #tpu.memory_space<vmem>>, vector<1x128x128xf32>
      %24 = vector.shape_cast %23 : vector<1x128x128xf32> to vector<128x128xf32>
      %cst_15 = arith.constant dense<0.000000e+00> : vector<128x128xf32>
      %25 = tpu.matmul %13, %22, %cst_15 {dimension_numbers = #tpu.dot_dimension_numbers<[1], [0], [0], [1], [0, 0, 1, 1], [], []>} : vector<128x128xf32>, vector<128x128xf32>, vector<128x128xf32> -> vector<128x128xf32>
      %26 = arith.addf %24, %25 : vector<128x128xf32>
      %c1_16 = arith.constant 1 : index
      %c0_17 = arith.constant 0 : index
      %c0_18 = arith.constant 0 : index
      %27 = vector.load %arg8[%c1_16, %c0_17, %c0_18] : memref<6x128x128xf32, #tpu.memory_space<vmem>>, vector<1x128x128xf32>
      %28 = vector.shape_cast %27 : vector<1x128x128xf32> to vector<128x128xf32>
      %29 = vector.shape_cast %26 : vector<128x128xf32> to vector<1x128x128xf32>
      tpu.vector_store %arg8[%c1_16, %c0_17, %c0_18], %29 {strides = array<i32>} : memref<6x128x128xf32, #tpu.memory_space<vmem>>, vector<1x128x128xf32>,
      %30 = arith.mulf %22, %14 : vector<128x128xf32>
      %c2 = arith.constant 2 : index
      %c0_19 = arith.constant 0 : index
      %c0_20 = arith.constant 0 : index
      %31 = vector.load %arg8[%c2, %c0_19, %c0_20] : memref<6x128x128xf32, #tpu.memory_space<vmem>>, vector<1x128x128xf32>
      %32 = vector.shape_cast %31 : vector<1x128x128xf32> to vector<128x128xf32>
      %cst_21 = arith.constant dense<0.000000e+00> : vector<128x128xf32>
      %33 = tpu.matmul %13, %30, %cst_21 {dimension_numbers = #tpu.dot_dimension_numbers<[1], [0], [0], [1], [0, 0, 1, 1], [], []>} : vector<128x128xf32>, vector<128x128xf32>, vector<128x128xf32> -> vector<128x128xf32>
      %34 = arith.addf %32, %33 : vector<128x128xf32>
      %c2_22 = arith.constant 2 : index
      %c0_23 = arith.constant 0 : index
      %c0_24 = arith.constant 0 : index
      %35 = vector.load %arg8[%c2_22, %c0_23, %c0_24] : memref<6x128x128xf32, #tpu.memory_space<vmem>>, vector<1x128x128xf32>
      %36 = vector.shape_cast %35 : vector<1x128x128xf32> to vector<128x128xf32>
      %37 = vector.shape_cast %34 : vector<128x128xf32> to vector<1x128x128xf32>
      tpu.vector_store %arg8[%c2_22, %c0_23, %c0_24], %37 {strides = array<i32>} : memref<6x128x128xf32, #tpu.memory_space<vmem>>, vector<1x128x128xf32>,
      %38 = arith.mulf %30, %14 : vector<128x128xf32>
      %c3 = arith.constant 3 : index
      %c0_25 = arith.constant 0 : index
      %c0_26 = arith.constant 0 : index
      %39 = vector.load %arg8[%c3, %c0_25, %c0_26] : memref<6x128x128xf32, #tpu.memory_space<vmem>>, vector<1x128x128xf32>
      %40 = vector.shape_cast %39 : vector<1x128x128xf32> to vector<128x128xf32>
      %cst_27 = arith.constant dense<0.000000e+00> : vector<128x128xf32>
      %41 = tpu.matmul %13, %38, %cst_27 {dimension_numbers = #tpu.dot_dimension_numbers<[1], [0], [0], [1], [0, 0, 1, 1], [], []>} : vector<128x128xf32>, vector<128x128xf32>, vector<128x128xf32> -> vector<128x128xf32>
      %42 = arith.addf %40, %41 : vector<128x128xf32>
      %c3_28 = arith.constant 3 : index
      %c0_29 = arith.constant 0 : index
      %c0_30 = arith.constant 0 : index
      %43 = vector.load %arg8[%c3_28, %c0_29, %c0_30] : memref<6x128x128xf32, #tpu.memory_space<vmem>>, vector<1x128x128xf32>
      %44 = vector.shape_cast %43 : vector<1x128x128xf32> to vector<128x128xf32>
      %45 = vector.shape_cast %42 : vector<128x128xf32> to vector<1x128x128xf32>
      tpu.vector_store %arg8[%c3_28, %c0_29, %c0_30], %45 {strides = array<i32>} : memref<6x128x128xf32, #tpu.memory_space<vmem>>, vector<1x128x128xf32>,
      %46 = arith.mulf %38, %14 : vector<128x128xf32>
      %c4 = arith.constant 4 : index
      %c0_31 = arith.constant 0 : index
      %c0_32 = arith.constant 0 : index
      %47 = vector.load %arg8[%c4, %c0_31, %c0_32] : memref<6x128x128xf32, #tpu.memory_space<vmem>>, vector<1x128x128xf32>
      %48 = vector.shape_cast %47 : vector<1x128x128xf32> to vector<128x128xf32>
      %cst_33 = arith.constant dense<0.000000e+00> : vector<128x128xf32>
      %49 = tpu.matmul %13, %46, %cst_33 {dimension_numbers = #tpu.dot_dimension_numbers<[1], [0], [0], [1], [0, 0, 1, 1], [], []>} : vector<128x128xf32>, vector<128x128xf32>, vector<128x128xf32> -> vector<128x128xf32>
      %50 = arith.addf %48, %49 : vector<128x128xf32>
      %c4_34 = arith.constant 4 : index
      %c0_35 = arith.constant 0 : index
      %c0_36 = arith.constant 0 : index
      %51 = vector.load %arg8[%c4_34, %c0_35, %c0_36] : memref<6x128x128xf32, #tpu.memory_space<vmem>>, vector<1x128x128xf32>
      %52 = vector.shape_cast %51 : vector<1x128x128xf32> to vector<128x128xf32>
      %53 = vector.shape_cast %50 : vector<128x128xf32> to vector<1x128x128xf32>
      tpu.vector_store %arg8[%c4_34, %c0_35, %c0_36], %53 {strides = array<i32>} : memref<6x128x128xf32, #tpu.memory_space<vmem>>, vector<1x128x128xf32>,
      %54 = arith.mulf %46, %14 : vector<128x128xf32>
      %c5 = arith.constant 5 : index
      %c0_37 = arith.constant 0 : index
      %c0_38 = arith.constant 0 : index
      %55 = vector.load %arg8[%c5, %c0_37, %c0_38] : memref<6x128x128xf32, #tpu.memory_space<vmem>>, vector<1x128x128xf32>
      %56 = vector.shape_cast %55 : vector<1x128x128xf32> to vector<128x128xf32>
      %cst_39 = arith.constant dense<0.000000e+00> : vector<128x128xf32>
      %57 = tpu.matmul %13, %54, %cst_39 {dimension_numbers = #tpu.dot_dimension_numbers<[1], [0], [0], [1], [0, 0, 1, 1], [], []>} : vector<128x128xf32>, vector<128x128xf32>, vector<128x128xf32> -> vector<128x128xf32>
      %58 = arith.addf %56, %57 : vector<128x128xf32>
      %c5_40 = arith.constant 5 : index
      %c0_41 = arith.constant 0 : index
      %c0_42 = arith.constant 0 : index
      %59 = vector.load %arg8[%c5_40, %c0_41, %c0_42] : memref<6x128x128xf32, #tpu.memory_space<vmem>>, vector<1x128x128xf32>
      %60 = vector.shape_cast %59 : vector<1x128x128xf32> to vector<128x128xf32>
      %61 = vector.shape_cast %58 : vector<128x128xf32> to vector<1x128x128xf32>
      tpu.vector_store %arg8[%c5_40, %c0_41, %c0_42], %61 {strides = array<i32>} : memref<6x128x128xf32, #tpu.memory_space<vmem>>, vector<1x128x128xf32>,
    } else {
    }
    %c1_i32 = arith.constant 1 : i32
    %10 = arith.cmpi eq, %arg1, %c1_i32 : i32
    %11 = arith.extui %10 : i1 to i32
    %c0_i32_3 = arith.constant 0 : i32
    %12 = arith.cmpi ne, %11, %c0_i32_3 : i32
    scf.if %12 {
      %c0 = arith.constant 0 : index
      %c0_4 = arith.constant 0 : index
      %13 = vector.load %arg4[%c0, %c0_4] : memref<128x128xf32, #tpu.memory_space<vmem>>, vector<128x128xf32>
      %cst = arith.constant 5.000000e+00 : f32
      %14 = vector.broadcast %cst : f32 to vector<128x128xf32>
      %15 = arith.divf %13, %14 : vector<128x128xf32>
      %cst_5 = arith.constant 1.000000e+00 : f32
      %16 = vector.broadcast %cst_5 : f32 to vector<128x128xf32>
      %17 = arith.subf %16, %15 : vector<128x128xf32>
      %18 = arith.mulf %13, %17 : vector<128x128xf32>
      %cst_6 = arith.constant 1.000000e+00 : f32
      %19 = vector.broadcast %cst_6 : f32 to vector<128x128xf32>
      %20 = arith.divf %13, %19 : vector<128x128xf32>
      %cst_7 = arith.constant 1.000000e+00 : f32
      %21 = vector.broadcast %cst_7 : f32 to vector<128x128xf32>
      %22 = arith.subf %20, %21 : vector<128x128xf32>
      %23 = arith.mulf %18, %22 : vector<128x128xf32>
      %cst_8 = arith.constant 1.000000e-01 : f32
      %24 = vector.broadcast %cst_8 : f32 to vector<128x128xf32>
      %25 = arith.addf %24, %23 : vector<128x128xf32>
      %cst_9 = arith.constant 0.899999976 : f32
      %26 = vector.broadcast %cst_9 : f32 to vector<128x128xf32>
      %27 = arith.mulf %26, %13 : vector<128x128xf32>
      %cst_10 = arith.constant 5.000000e+00 : f32
      %28 = vector.broadcast %cst_10 : f32 to vector<128x128xf32>
      %29 = arith.addf %28, %27 : vector<128x128xf32>
      %cst_11 = arith.constant 1.000000e+00 : f32
      %30 = vector.broadcast %cst_11 : f32 to vector<128x128xf32>
      %31 = arith.divf %30, %29 : vector<128x128xf32>
      %cst_12 = arith.constant -1.000000e-01 : f32
      %32 = vector.broadcast %cst_12 : f32 to vector<128x128xf32>
      %33 = arith.mulf %32, %31 : vector<128x128xf32>
      %c5 = arith.constant 5 : index
      %c0_13 = arith.constant 0 : index
      %c0_14 = arith.constant 0 : index
      %34 = vector.load %arg8[%c5, %c0_13, %c0_14] : memref<6x128x128xf32, #tpu.memory_space<vmem>>, vector<1x128x128xf32>
      %35 = vector.shape_cast %34 : vector<1x128x128xf32> to vector<128x128xf32>
      %c4 = arith.constant 4 : index
      %c0_15 = arith.constant 0 : index
      %c0_16 = arith.constant 0 : index
      %36 = vector.load %arg8[%c4, %c0_15, %c0_16] : memref<6x128x128xf32, #tpu.memory_space<vmem>>, vector<1x128x128xf32>
      %37 = vector.shape_cast %36 : vector<1x128x128xf32> to vector<128x128xf32>
      %38 = arith.mulf %33, %35 : vector<128x128xf32>
      %39 = arith.addf %37, %38 : vector<128x128xf32>
      %c3 = arith.constant 3 : index
      %c0_17 = arith.constant 0 : index
      %c0_18 = arith.constant 0 : index
      %40 = vector.load %arg8[%c3, %c0_17, %c0_18] : memref<6x128x128xf32, #tpu.memory_space<vmem>>, vector<1x128x128xf32>
      %41 = vector.shape_cast %40 : vector<1x128x128xf32> to vector<128x128xf32>
      %42 = arith.mulf %33, %39 : vector<128x128xf32>
      %43 = arith.addf %41, %42 : vector<128x128xf32>
      %c2 = arith.constant 2 : index
      %c0_19 = arith.constant 0 : index
      %c0_20 = arith.constant 0 : index
      %44 = vector.load %arg8[%c2, %c0_19, %c0_20] : memref<6x128x128xf32, #tpu.memory_space<vmem>>, vector<1x128x128xf32>
      %45 = vector.shape_cast %44 : vector<1x128x128xf32> to vector<128x128xf32>
      %46 = arith.mulf %33, %43 : vector<128x128xf32>
      %47 = arith.addf %45, %46 : vector<128x128xf32>
      %c1 = arith.constant 1 : index
      %c0_21 = arith.constant 0 : index
      %c0_22 = arith.constant 0 : index
      %48 = vector.load %arg8[%c1, %c0_21, %c0_22] : memref<6x128x128xf32, #tpu.memory_space<vmem>>, vector<1x128x128xf32>
      %49 = vector.shape_cast %48 : vector<1x128x128xf32> to vector<128x128xf32>
      %50 = arith.mulf %33, %47 : vector<128x128xf32>
      %51 = arith.addf %49, %50 : vector<128x128xf32>
      %c0_23 = arith.constant 0 : index
      %c0_24 = arith.constant 0 : index
      %c0_25 = arith.constant 0 : index
      %52 = vector.load %arg8[%c0_23, %c0_24, %c0_25] : memref<6x128x128xf32, #tpu.memory_space<vmem>>, vector<1x128x128xf32>
      %53 = vector.shape_cast %52 : vector<1x128x128xf32> to vector<128x128xf32>
      %54 = arith.mulf %33, %51 : vector<128x128xf32>
      %55 = arith.addf %53, %54 : vector<128x128xf32>
      %56 = arith.mulf %31, %55 : vector<128x128xf32>
      %57 = arith.mulf %13, %56 : vector<128x128xf32>
      %58 = arith.addf %25, %57 : vector<128x128xf32>
      %c0_26 = arith.constant 0 : index
      %c0_27 = arith.constant 0 : index
      %59 = vector.load %arg7[%c0_26, %c0_27] : memref<128x128xf32, #tpu.memory_space<vmem>>, vector<128x128xf32>
      tpu.vector_store %arg7[%c0_26, %c0_27], %58 {strides = array<i32>} : memref<128x128xf32, #tpu.memory_space<vmem>>, vector<128x128xf32>,
    } else {
    }
    return
  }
  func.func @transform_0(%arg0: i32, %arg1: i32, %arg2: memref<4xi32, #tpu.memory_space<smem>>, %arg3: memref<4xi32, #tpu.memory_space<smem>>) -> (i32, i32) {
    %c0_i32 = arith.constant 0 : i32
    %c0_i32_0 = arith.constant 0 : i32
    return %arg0, %c0_i32 : i32, i32
  }
  func.func @transform_1(%arg0: i32, %arg1: i32, %arg2: memref<4xi32, #tpu.memory_space<smem>>, %arg3: memref<4xi32, #tpu.memory_space<smem>>) -> (i32, i32) {
    %c2_i32 = arith.constant 2 : i32
    %0 = arith.muli %arg0, %c2_i32 : i32
    %1 = arith.addi %0, %arg1 : i32
    %2 = arith.index_cast %1 : i32 to index
    %3 = memref.load %arg3[%2] : memref<4xi32, #tpu.memory_space<smem>>
    %c0_i32 = arith.constant 0 : i32
    return %arg0, %3 : i32, i32
  }
  func.func @transform_2(%arg0: i32, %arg1: i32, %arg2: memref<4xi32, #tpu.memory_space<smem>>, %arg3: memref<4xi32, #tpu.memory_space<smem>>) -> (i32, i32) {
    %c2_i32 = arith.constant 2 : i32
    %0 = arith.muli %arg0, %c2_i32 : i32
    %1 = arith.addi %0, %arg1 : i32
    %2 = arith.index_cast %1 : i32 to index
    %3 = memref.load %arg3[%2] : memref<4xi32, #tpu.memory_space<smem>>
    %c0_i32 = arith.constant 0 : i32
    %c0_i32_0 = arith.constant 0 : i32
    return %3, %c0_i32 : i32, i32
  }
  func.func @transform_3(%arg0: i32, %arg1: i32, %arg2: memref<4xi32, #tpu.memory_space<smem>>, %arg3: memref<4xi32, #tpu.memory_space<smem>>) -> (i32, i32) {
    %c0_i32 = arith.constant 0 : i32
    %c0_i32_0 = arith.constant 0 : i32
    return %arg0, %c0_i32 : i32, i32
  }
}

</mosaic_0001>

<llo_original>
// kernel: tpu_custom_call.1
$region0: #{tpu_custom_call.1}
  #allocation0 [shape = 'u32[]', space=smem, size = 0x4, offset = 0x4, fixed_abs, tag = 'smem constant byte address 0x4 - core index']
  #allocation1 [shape = 'u32[144,128]{1,0:T(1,128)}', space=vmem, size = 0x12000, scoped, tag = 'internal scratch']
  #allocation2 [shape = 'f32[6,128,128]{2,1,0:T(8,128)}', space=vmem, size = 0x60000, scoped, tag = 'scratch operand']
  #allocation3 [shape = 's32[1]{0}', space=sflag, size = 0x4, scoped, tag = 'scoped memory for tpu_custom_call.1']
  #allocation4 [shape = 'u8[512]{0}', space=smem, size = 0x200, scoped, tag = 'prefetched SMEM operand 0']
  #allocation5 [shape = 'u8[512]{0}', space=smem, size = 0x200, scoped, tag = 'prefetched SMEM operand 1']
  %s0 = inlined_call_operand.hbm [shape: s32[4], index: 0, kind: input, shape index: {}]
  %s1 = inlined_call_operand.vmem [shape: s32[4], index: 1, kind: input, shape index: {}]
  %s2 = inlined_call_operand.hbm [shape: f32[256,128], index: 2, kind: input, shape index: {}]
  %s3 = inlined_call_operand.hbm [shape: f32[256,256], index: 3, kind: input, shape index: {}]
  %s4 = inlined_call_operand.hbm [shape: f32[256,128], index: 4, kind: input, shape index: {}]
  %s5 = inlined_call_operand.hbm [shape: f32[256,128], index: 5, kind: output, shape index: {}]
  %s6 = sld [smem:[#allocation0]]
  $region69: #{tpu_custom_call.1} parent=0
    _
  %s8 = ssub.s32 1, %s6
  %s9 = scalar_select 0, %s8, %s6
  %11 = dma.hbm_to_smem %s0, 16, [#allocation4], [#allocation3]
  %s12 = sshll.u32 %s1, 4
  %s13 = int_to_ptr.vmem [resolvable:$true] %s12
  %15 = dma.vmem_to_smem %s13, 16, [#allocation5], [#allocation3]
  %16 = dma.done [#allocation3], 32
  %17 = sfence
  $region1: #{tpu_custom_call.1} parent=0
    #allocation6 [shape = 'u8[131072]{0}', space=vmem, size = 0x20000, scoped, tag = 'input window, operand 2']
    #allocation7 [shape = 's32[2]{0}', space=sflag, size = 0x8, scoped, tag = 'scoped memory for tpu_custom_call.1']
    #allocation8 [shape = 's32[2]{0}', space=sflag, size = 0x8, scoped, tag = 'scoped memory for tpu_custom_call.1']
    #allocation9 [shape = 'u8[131072]{0}', space=vmem, size = 0x20000, scoped, tag = 'input window, operand 3']
    #allocation10 [shape = 's32[2]{0}', space=sflag, size = 0x8, scoped, tag = 'scoped memory for tpu_custom_call.1']
    #allocation11 [shape = 'u8[131072]{0}', space=vmem, size = 0x20000, scoped, tag = 'input window, operand 4']
    #allocation12 [shape = 'u8[131072]{0}', space=vmem, size = 0x20000, scoped, tag = 'output window, operand 0']
    %18 = vsyncpa [#allocation7], 0
    %s19 = scalar_lea.sflag [#allocation7], 1
    %20 = vsyncpa %s19, 0
    %21 = vsyncpa [#allocation10], 0
    %s22 = scalar_lea.sflag [#allocation10], 1
    %23 = vsyncpa %s22, 0
    %24 = vsyncpa [#allocation8], 0
    %s25 = scalar_lea.sflag [#allocation8], 1
    %26 = vsyncpa %s25, 0
    loop: start=0, step=1, limit=6
    $region2: #{tpu_custom_call.1} parent=1 // loop_pre_header
      _
    $region3: #{tpu_custom_call.1} parent=1 // loop_header
      %s28 = sphi 0, %s32
      %p29 = scmp.ge.s32.totalorder %s28, 6
      %s35 = sphi 0, %s47
      %s36 = sphi 0, %s43
      %s37 = sphi 0, %s35
      %s38 = sphi 0, %s36
      %s39 = sphi 0, %s37
      %s40 = sphi 0, %s38
      %s50 = sphi 0, %s52
      %s53 = sphi 0, %s50
      %s54 = sphi 0, %s53
      %s70 = sphi 0, %s54
      %s84 = sphi 0, %s86
      %s87 = sphi 0, %s84
      %s88 = sphi 0, %s87
      %s104 = sphi 0, %s88
      %s116 = sphi 0, %s118
      %s119 = sphi 0, %s116
      %s120 = sphi 0, %s119
      %s136 = sphi 0, %s120
      %s142 = sphi 0, %s144
      %s145 = sphi 0, %s142
      %s146 = sphi 0, %s145
      %s162 = sphi 0, %s146
    $region4: #{tpu_custom_call.1} parent=1 // loop_header_branch
      %31 = sbr.rel (%p29) target = $region8
    $region5: #{tpu_custom_call.1} parent=1 // loop_body
      %s33 = ssub.s32 %s28, 1
      %s34 = ssub.s32 %s28, 2
      %s41 = sadd.s32 1, %s36
      %p42 = scmp.ge.s32.totalorder %s41, 2
      %s43 = scalar_select %p42, 0, %s41
      %s44 = sadd.s32 1, %s35
      %s45 = scalar_select %p42, %s44, %s35
      %p46 = scmp.ge.s32.totalorder %s45, 2
      %s47 = scalar_select %p46, 0, %s45
      %s48 = ssub.s32 %s35, %s47
      %p49 = scmp.eq.s32.totalorder %s48, 0
      %s51 = sadd.s32 %s50, 1
      %s52 = scalar_select %p49, %s50, %s51
      %p55 = pneg %p49
      %p56 = scmp.eq.s32.totalorder %s28, 3
      %p57 = por %p55, %p56
      %p58 = scmp.ne.s32.totalorder %s50, %s53
      %p59 = scmp.eq.s32.totalorder %s28, 0
      %p60 = por %p58, %p59
      %p61 = scmp.ne.s32.totalorder %s50, %s53
      %p62 = scmp.eq.s32.totalorder %s33, 3
      %p63 = por %p61, %p62
      %p64 = scmp.ne.s32.totalorder %s53, %s54
      %p65 = scmp.eq.s32.totalorder %s33, 0
      %p66 = por %p64, %p65
      %p67 = scmp.ne.s32.totalorder %s53, %s54
      %p68 = scmp.eq.s32.totalorder %s34, 3
      %p69 = por %p67, %p68
      %p71 = scmp.ne.s32.totalorder %s54, %s70
      %p72 = scmp.eq.s32.totalorder %s34, 0
      %p73 = por %p71, %p72
      %s74 = smul.u32 %s35, 2
      %s75 = sadd.s32 %s74, %s36
      %s76 = sld [smem:[#allocation5 + %s75]]
      %s77 = smul.u32 %s47, 2
      %s78 = sadd.s32 %s77, %s43
      %s79 = sld [smem:[#allocation5 + %s78]]
      %s80 = ssub.s32 %s35, %s47
      %s81 = ssub.s32 %s76, %s79
      %s82 = sor.u32 %s80, %s81
      %p83 = scmp.eq.s32.totalorder %s82, 0
      %s85 = sadd.s32 %s84, 1
      %s86 = scalar_select %p83, %s84, %s85
      %p89 = pneg %p83
      %p90 = scmp.eq.s32.totalorder %s28, 3
      %p91 = por %p89, %p90
      %p92 = scmp.ne.s32.totalorder %s84, %s87
      %p93 = scmp.eq.s32.totalorder %s28, 0
      %p94 = por %p92, %p93
      %p95 = scmp.ne.s32.totalorder %s84, %s87
      %p96 = scmp.eq.s32.totalorder %s33, 3
      %p97 = por %p95, %p96
      %p98 = scmp.ne.s32.totalorder %s87, %s88
      %p99 = scmp.eq.s32.totalorder %s33, 0
      %p100 = por %p98, %p99
      %p101 = scmp.ne.s32.totalorder %s87, %s88
      %p102 = scmp.eq.s32.totalorder %s34, 3
      %p103 = por %p101, %p102
      %p105 = scmp.ne.s32.totalorder %s88, %s104
      %p106 = scmp.eq.s32.totalorder %s34, 0
      %p107 = por %p105, %p106
      %s108 = smul.u32 %s35, 2
      %s109 = sadd.s32 %s108, %s36
      %s110 = sld [smem:[#allocation5 + %s109]]
      %s111 = smul.u32 %s47, 2
      %s112 = sadd.s32 %s111, %s43
      %s113 = sld [smem:[#allocation5 + %s112]]
      %s114 = ssub.s32 %s110, %s113
      %p115 = scmp.eq.s32.totalorder %s114, 0
      %s117 = sadd.s32 %s116, 1
      %s118 = scalar_select %p115, %s116, %s117
      %p121 = pneg %p115
      %p122 = scmp.eq.s32.totalorder %s28, 3
      %p123 = por %p121, %p122
      %p124 = scmp.ne.s32.totalorder %s116, %s119
      %p125 = scmp.eq.s32.totalorder %s28, 0
      %p126 = por %p124, %p125
      %p127 = scmp.ne.s32.totalorder %s116, %s119
      %p128 = scmp.eq.s32.totalorder %s33, 3
      %p129 = por %p127, %p128
      %p130 = scmp.ne.s32.totalorder %s119, %s120
      %p131 = scmp.eq.s32.totalorder %s33, 0
      %p132 = por %p130, %p131
      %p133 = scmp.ne.s32.totalorder %s119, %s120
      %p134 = scmp.eq.s32.totalorder %s34, 3
      %p135 = por %p133, %p134
      %p137 = scmp.ne.s32.totalorder %s120, %s136
      %p138 = scmp.eq.s32.totalorder %s34, 0
      %p139 = por %p137, %p138
      %s140 = ssub.s32 %s35, %s47
      %p141 = scmp.eq.s32.totalorder %s140, 0
      %s143 = sadd.s32 %s142, 1
      %s144 = scalar_select %p141, %s142, %s143
      %p147 = pneg %p141
      %p148 = scmp.eq.s32.totalorder %s28, 3
      %p149 = por %p147, %p148
      %p150 = scmp.ne.s32.totalorder %s142, %s145
      %p151 = scmp.eq.s32.totalorder %s28, 0
      %p152 = por %p150, %p151
      %p153 = scmp.ne.s32.totalorder %s142, %s145
      %p154 = scmp.eq.s32.totalorder %s33, 3
      %p155 = por %p153, %p154
      %p156 = scmp.ne.s32.totalorder %s145, %s146
      %p157 = scmp.eq.s32.totalorder %s33, 0
      %p158 = por %p156, %p157
      %p159 = scmp.ne.s32.totalorder %s145, %s146
      %p160 = scmp.eq.s32.totalorder %s34, 3
      %p161 = por %p159, %p160
      %p163 = scmp.ne.s32.totalorder %s146, %s162
      %p164 = scmp.eq.s32.totalorder %s34, 0
      %p165 = por %p163, %p164
      %p166 = scmp.le.s32.totalorder 1, %s28
      %p167 = scmp.lt.s32.totalorder %s28, 5
      %p168 = pnand %p166, %p167
      %p169 = pneg %p168
      // Predicated region
      $region9: #{tpu_custom_call.1} parent=5 // pred_check
        _
      $region10: #{tpu_custom_call.1} parent=5 // pred_check_branch
        %171 = sbr.rel (%p168) target = $region12
      $region11: #{tpu_custom_call.1} parent=5 // pred_region
        %s172 = ssub.s32 %s28, 1
      $region12: #{tpu_custom_call.1} parent=5 // pred_fallthru
        _
      %p173 = scmp.lt.s32.totalorder %s28, 4
      // Predicated region
      $region13: #{tpu_custom_call.1} parent=5 // pred_check
        %p174 = pneg %p173
      $region14: #{tpu_custom_call.1} parent=5 // pred_check_branch
        %176 = sbr.rel (%p174) target = $region16
      $region15: #{tpu_custom_call.1} parent=5 // pred_region
        // Predicated region
        $region17: #{tpu_custom_call.1} parent=15 // pred_check
          %p177 = pneg %p60
        $region18: #{tpu_custom_call.1} parent=15 // pred_check_branch
          %179 = sbr.rel (%p177) target = $region20
        $region19: #{tpu_custom_call.1} parent=15 // pred_region
          %s180 = sand.u32 %s50, 1
          %s181 = scalar_lea.sflag [#allocation7], %s180
          %s182 = sand.u32 %s50, 1
          %s183 = smul.addr %s182, 128
          %s184 = scalar_lea.vmem [#allocation6], %s183
          %s185 = smul.u32 16, %s35
          %s187 = ssub.s32 2048, 2048
          %188 = vsyncadd %s181, %s187
          %s189 = smul.addr %s185, 128
          %s190 = scalar_lea.hbm %s2, %s189
          %s191 = sshll.u32 %s184, 4
          %s192 = int_to_ptr.vmem [resolvable:$true] %s191
          %197 = dma.hbm_to_vmem [thread:$0]  %s190, 2048, %s192, %s181, 128, 128, 8
        $region20: #{tpu_custom_call.1} parent=15 // pred_fallthru
          _
        // Predicated region
        $region21: #{tpu_custom_call.1} parent=15 // pred_check
          %p198 = pneg %p94
        $region22: #{tpu_custom_call.1} parent=15 // pred_check_branch
          %200 = sbr.rel (%p198) target = $region24
        $region23: #{tpu_custom_call.1} parent=15 // pred_region
          %s201 = sand.u32 %s28, 1
          %s202 = scalar_lea.sflag [#allocation10], %s201
          %s203 = sand.u32 %s84, 1
          %s204 = smul.addr %s203, 128
          %s205 = scalar_lea.vmem [#allocation9], %s204
          %s206 = smul.u32 %s35, 2
          %s207 = sadd.s32 %s206, %s36
          %s208 = sld [smem:[#allocation5 + %s207]]
          %s209 = smul.u32 16, %s35
          %s211 = ssub.s32 2048, 2048
          %212 = vsyncadd %s202, %s211
          %s213 = smul.addr %s209, 2
          %s214 = sadd.s32 %s208, %s213
          %s215 = smul.addr %s214, 128
          %s216 = scalar_lea.hbm %s3, %s215
          %s217 = sshll.u32 %s205, 4
          %s218 = int_to_ptr.vmem [resolvable:$true] %s217
          %223 = dma.hbm_to_vmem [thread:$0]  %s216, 2048, %s218, %s202, 256, 128, 8
        $region24: #{tpu_custom_call.1} parent=15 // pred_fallthru
          _
        // Predicated region
        $region25: #{tpu_custom_call.1} parent=15 // pred_check
          %p224 = pneg %p126
        $region26: #{tpu_custom_call.1} parent=15 // pred_check_branch
          %226 = sbr.rel (%p224) target = $region28
        $region27: #{tpu_custom_call.1} parent=15 // pred_region
          %s227 = sand.u32 %s28, 1
          %s228 = scalar_lea.sflag [#allocation10], %s227
          %s229 = sand.u32 %s116, 1
          %s230 = smul.addr %s229, 128
          %s231 = scalar_lea.vmem [#allocation11], %s230
          %s232 = smul.u32 %s35, 2
          %s233 = sadd.s32 %s232, %s36
          %s234 = sld [smem:[#allocation5 + %s233]]
          %s235 = smul.u32 16, %s234
          %s237 = ssub.s32 2048, 2048
          %238 = vsyncadd %s228, %s237
          %s239 = smul.addr %s235, 128
          %s240 = scalar_lea.hbm %s4, %s239
          %s241 = sshll.u32 %s231, 4
          %s242 = int_to_ptr.vmem [resolvable:$true] %s241
          %247 = dma.hbm_to_vmem [thread:$0]  %s240, 2048, %s242, %s228, 128, 128, 8
        $region28: #{tpu_custom_call.1} parent=15 // pred_fallthru
          _
      $region16: #{tpu_custom_call.1} parent=5 // pred_fallthru
        _
      %p248 = scmp.le.s32.totalorder 1, %s28
      %p249 = scmp.lt.s32.totalorder %s28, 5
      %p250 = pnand %p248, %p249
      %p251 = pneg %p250
      // Predicated region
      $region29: #{tpu_custom_call.1} parent=5 // pred_check
        _
      $region30: #{tpu_custom_call.1} parent=5 // pred_check_branch
        %253 = sbr.rel (%p250) target = $region32
      $region31: #{tpu_custom_call.1} parent=5 // pred_region
        %s254 = ssub.s32 %s28, 1
        %s255 = sand.u32 %s53, 1
        %s256 = scalar_lea.sflag [#allocation7], %s255
        %s257 = sand.u32 %s53, 1
        %s258 = smul.addr %s257, 128
        %s259 = scalar_lea.vmem [#allocation6], %s258
        // Predicated region
        $region33: #{tpu_custom_call.1} parent=31 // pred_check
          %p260 = pneg %p66
        $region34: #{tpu_custom_call.1} parent=31 // pred_check_branch
          %262 = sbr.rel (%p260) target = $region36
        $region35: #{tpu_custom_call.1} parent=31 // pred_region
          %263 = dma.done %s256, 2048
        $region36: #{tpu_custom_call.1} parent=31 // pred_fallthru
          _
        %s264 = sand.u32 %s33, 1
        %s265 = scalar_lea.sflag [#allocation10], %s264
        %s266 = sand.u32 %s87, 1
        %s267 = smul.addr %s266, 128
        %s268 = scalar_lea.vmem [#allocation9], %s267
        // Predicated region
        $region37: #{tpu_custom_call.1} parent=31 // pred_check
          %p269 = pneg %p100
        $region38: #{tpu_custom_call.1} parent=31 // pred_check_branch
          %271 = sbr.rel (%p269) target = $region40
        $region39: #{tpu_custom_call.1} parent=31 // pred_region
          %272 = dma.done %s265, 2048
        $region40: #{tpu_custom_call.1} parent=31 // pred_fallthru
          _
        %s273 = sand.u32 %s33, 1
        %s274 = scalar_lea.sflag [#allocation10], %s273
        %s275 = sand.u32 %s119, 1
        %s276 = smul.addr %s275, 128
        %s277 = scalar_lea.vmem [#allocation11], %s276
        // Predicated region
        $region41: #{tpu_custom_call.1} parent=31 // pred_check
          %p278 = pneg %p132
        $region42: #{tpu_custom_call.1} parent=31 // pred_check_branch
          %280 = sbr.rel (%p278) target = $region44
        $region43: #{tpu_custom_call.1} parent=31 // pred_region
          %281 = dma.done %s274, 2048
        $region44: #{tpu_custom_call.1} parent=31 // pred_fallthru
          _
        %s282 = sand.u32 %s53, 1
        %s283 = scalar_lea.sflag [#allocation7], %s282
        %s284 = sand.u32 %s53, 1
        %s285 = smul.addr %s284, 128
        %s286 = scalar_lea.vmem [#allocation6], %s285
        %p287 = pneg %p66
        %p288 = pneg %p63
        %s289 = sand.u32 %s33, 1
        %s290 = scalar_lea.sflag [#allocation10], %s289
        %s291 = sand.u32 %s87, 1
        %s292 = smul.addr %s291, 128
        %s293 = scalar_lea.vmem [#allocation9], %s292
        %p294 = pneg %p100
        %p295 = pneg %p97
        %s296 = sand.u32 %s33, 1
        %s297 = scalar_lea.sflag [#allocation10], %s296
        %s298 = sand.u32 %s119, 1
        %s299 = smul.addr %s298, 128
        %s300 = scalar_lea.vmem [#allocation11], %s299
        %p301 = pneg %p132
        %p302 = pneg %p129
        %p303 = pneg %p158
        %p304 = pneg %p155
        %s305 = sand.u32 %s145, 1
        %s306 = scalar_lea.sflag [#allocation8], %s305
        %s307 = sand.u32 %s145, 1
        %s308 = smul.addr %s307, 128
        %s309 = scalar_lea.vmem [#allocation12], %s308
        %s310 = smul.u32 16, %s37
        %s311 = smul.u32 %s37, 2
        %s312 = sadd.s32 %s311, %s38
        %s313 = sld [smem:[#allocation5 + %s312]]
        %s314 = smul.u32 16, %s37
        %s315 = smul.u32 %s37, 2
        %s316 = sadd.s32 %s315, %s38
        %s317 = sld [smem:[#allocation5 + %s316]]
        %s318 = smul.u32 16, %s317
        %s319 = smul.u32 16, %s37
        %p320 = scmp.eq.s32.totalorder %s38, 0
        // Predicated region
        $region45: #{tpu_custom_call.1} parent=31 // pred_check
          %p321 = pneg %p320
        $region46: #{tpu_custom_call.1} parent=31 // pred_check_branch
          %323 = sbr.rel (%p321) target = $region48
        $region47: #{tpu_custom_call.1} parent=31 // pred_region
          %324 = vst [vmem:[#allocation2] sm:$0xff] 0.0
          %325 = vst [vmem:[#allocation2 + $0x8] sm:$0xff] 0.0
          %326 = vst [vmem:[#allocation2 + $0x10] sm:$0xff] 0.0
          %327 = vst [vmem:[#allocation2 + $0x18] sm:$0xff] 0.0
          %328 = vst [vmem:[#allocation2 + $0x20] sm:$0xff] 0.0
          %329 = vst [vmem:[#allocation2 + $0x28] sm:$0xff] 0.0
          %330 = vst [vmem:[#allocation2 + $0x30] sm:$0xff] 0.0
          %331 = vst [vmem:[#allocation2 + $0x38] sm:$0xff] 0.0
          %332 = vst [vmem:[#allocation2 + $0x40] sm:$0xff] 0.0
          %333 = vst [vmem:[#allocation2 + $0x48] sm:$0xff] 0.0
          %334 = vst [vmem:[#allocation2 + $0x50] sm:$0xff] 0.0
          %335 = vst [vmem:[#allocation2 + $0x58] sm:$0xff] 0.0
          %336 = vst [vmem:[#allocation2 + $0x60] sm:$0xff] 0.0
          %337 = vst [vmem:[#allocation2 + $0x68] sm:$0xff] 0.0
          %338 = vst [vmem:[#allocation2 + $0x70] sm:$0xff] 0.0
          %339 = vst [vmem:[#allocation2 + $0x78] sm:$0xff] 0.0
          %340 = vst [vmem:[#allocation2 + $0x80] sm:$0xff] 0.0
          %341 = vst [vmem:[#allocation2 + $0x88] sm:$0xff] 0.0
          %342 = vst [vmem:[#allocation2 + $0x90] sm:$0xff] 0.0
          %343 = vst [vmem:[#allocation2 + $0x98] sm:$0xff] 0.0
          %344 = vst [vmem:[#allocation2 + $0xa0] sm:$0xff] 0.0
          %345 = vst [vmem:[#allocation2 + $0xa8] sm:$0xff] 0.0
          %346 = vst [vmem:[#allocation2 + $0xb0] sm:$0xff] 0.0
          %347 = vst [vmem:[#allocation2 + $0xb8] sm:$0xff] 0.0
          %348 = vst [vmem:[#allocation2 + $0xc0] sm:$0xff] 0.0
          %349 = vst [vmem:[#allocation2 + $0xc8] sm:$0xff] 0.0
          %350 = vst [vmem:[#allocation2 + $0xd0] sm:$0xff] 0.0
          %351 = vst [vmem:[#allocation2 + $0xd8] sm:$0xff] 0.0
          %352 = vst [vmem:[#allocation2 + $0xe0] sm:$0xff] 0.0
          %353 = vst [vmem:[#allocation2 + $0xe8] sm:$0xff] 0.0
          %354 = vst [vmem:[#allocation2 + $0xf0] sm:$0xff] 0.0
          %355 = vst [vmem:[#allocation2 + $0xf8] sm:$0xff] 0.0
          %356 = vst [vmem:[#allocation2 + $0x100] sm:$0xff] 0.0
          %357 = vst [vmem:[#allocation2 + $0x108] sm:$0xff] 0.0
          %358 = vst [vmem:[#allocation2 + $0x110] sm:$0xff] 0.0
          %359 = vst [vmem:[#allocation2 + $0x118] sm:$0xff] 0.0
          %360 = vst [vmem:[#allocation2 + $0x120] sm:$0xff] 0.0
          %361 = vst [vmem:[#allocation2 + $0x128] sm:$0xff] 0.0
          %362 = vst [vmem:[#allocation2 + $0x130] sm:$0xff] 0.0
          %363 = vst [vmem:[#allocation2 + $0x138] sm:$0xff] 0.0
          %364 = vst [vmem:[#allocation2 + $0x140] sm:$0xff] 0.0
          %365 = vst [vmem:[#allocation2 + $0x148] sm:$0xff] 0.0
          %366 = vst [vmem:[#allocation2 + $0x150] sm:$0xff] 0.0
          %367 = vst [vmem:[#allocation2 + $0x158] sm:$0xff] 0.0
          %368 = vst [vmem:[#allocation2 + $0x160] sm:$0xff] 0.0
          %369 = vst [vmem:[#allocation2 + $0x168] sm:$0xff] 0.0
          %370 = vst [vmem:[#allocation2 + $0x170] sm:$0xff] 0.0
          %371 = vst [vmem:[#allocation2 + $0x178] sm:$0xff] 0.0
          %372 = vst [vmem:[#allocation2 + $0x180] sm:$0xff] 0.0
          %373 = vst [vmem:[#allocation2 + $0x188] sm:$0xff] 0.0
          %374 = vst [vmem:[#allocation2 + $0x190] sm:$0xff] 0.0
          %375 = vst [vmem:[#allocation2 + $0x198] sm:$0xff] 0.0
          %376 = vst [vmem:[#allocation2 + $0x1a0] sm:$0xff] 0.0
          %377 = vst [vmem:[#allocation2 + $0x1a8] sm:$0xff] 0.0
          %378 = vst [vmem:[#allocation2 + $0x1b0] sm:$0xff] 0.0
          %379 = vst [vmem:[#allocation2 + $0x1b8] sm:$0xff] 0.0
          %380 = vst [vmem:[#allocation2 + $0x1c0] sm:$0xff] 0.0
          %381 = vst [vmem:[#allocation2 + $0x1c8] sm:$0xff] 0.0
          %382 = vst [vmem:[#allocation2 + $0x1d0] sm:$0xff] 0.0
          %383 = vst [vmem:[#allocation2 + $0x1d8] sm:$0xff] 0.0
          %384 = vst [vmem:[#allocation2 + $0x1e0] sm:$0xff] 0.0
          %385 = vst [vmem:[#allocation2 + $0x1e8] sm:$0xff] 0.0
          %386 = vst [vmem:[#allocation2 + $0x1f0] sm:$0xff] 0.0
          %387 = vst [vmem:[#allocation2 + $0x1f8] sm:$0xff] 0.0
          %388 = vst [vmem:[#allocation2 + $0x200] sm:$0xff] 0.0
          %389 = vst [vmem:[#allocation2 + $0x208] sm:$0xff] 0.0
          %390 = vst [vmem:[#allocation2 + $0x210] sm:$0xff] 0.0
          %391 = vst [vmem:[#allocation2 + $0x218] sm:$0xff] 0.0
          %392 = vst [vmem:[#allocation2 + $0x220] sm:$0xff] 0.0
          %393 = vst [vmem:[#allocation2 + $0x228] sm:$0xff] 0.0
          %394 = vst [vmem:[#allocation2 + $0x230] sm:$0xff] 0.0
          %395 = vst [vmem:[#allocation2 + $0x238] sm:$0xff] 0.0
          %396 = vst [vmem:[#allocation2 + $0x240] sm:$0xff] 0.0
          %397 = vst [vmem:[#allocation2 + $0x248] sm:$0xff] 0.0
          %398 = vst [vmem:[#allocation2 + $0x250] sm:$0xff] 0.0
          %399 = vst [vmem:[#allocation2 + $0x258] sm:$0xff] 0.0
          %400 = vst [vmem:[#allocation2 + $0x260] sm:$0xff] 0.0
          %401 = vst [vmem:[#allocation2 + $0x268] sm:$0xff] 0.0
          %402 = vst [vmem:[#allocation2 + $0x270] sm:$0xff] 0.0
          %403 = vst [vmem:[#allocation2 + $0x278] sm:$0xff] 0.0
          %404 = vst [vmem:[#allocation2 + $0x280] sm:$0xff] 0.0
          %405 = vst [vmem:[#allocation2 + $0x288] sm:$0xff] 0.0
          %406 = vst [vmem:[#allocation2 + $0x290] sm:$0xff] 0.0
          %407 = vst [vmem:[#allocation2 + $0x298] sm:$0xff] 0.0
          %408 = vst [vmem:[#allocation2 + $0x2a0] sm:$0xff] 0.0
          %409 = vst [vmem:[#allocation2 + $0x2a8] sm:$0xff] 0.0
          %410 = vst [vmem:[#allocation2 + $0x2b0] sm:$0xff] 0.0
          %411 = vst [vmem:[#allocation2 + $0x2b8] sm:$0xff] 0.0
          %412 = vst [vmem:[#allocation2 + $0x2c0] sm:$0xff] 0.0
          %413 = vst [vmem:[#allocation2 + $0x2c8] sm:$0xff] 0.0
          %414 = vst [vmem:[#allocation2 + $0x2d0] sm:$0xff] 0.0
          %415 = vst [vmem:[#allocation2 + $0x2d8] sm:$0xff] 0.0
          %416 = vst [vmem:[#allocation2 + $0x2e0] sm:$0xff] 0.0
          %417 = vst [vmem:[#allocation2 + $0x2e8] sm:$0xff] 0.0
          %418 = vst [vmem:[#allocation2 + $0x2f0] sm:$0xff] 0.0
          %419 = vst [vmem:[#allocation2 + $0x2f8] sm:$0xff] 0.0
        $region48: #{tpu_custom_call.1} parent=31 // pred_fallthru
          _
        %s420 = smul.u32 %s37, 2
        %s421 = sadd.s32 %s420, %s38
        %s422 = sld [smem:[#allocation4 + %s421]]
        %p423 = scmp.ne.s32.totalorder %s422, 0
        // Predicated region
        $region49: #{tpu_custom_call.1} parent=31 // pred_check
          %p424 = pneg %p423
        $region50: #{tpu_custom_call.1} parent=31 // pred_check_branch
          %426 = sbr.rel (%p424) target = $region52
        $region51: #{tpu_custom_call.1} parent=31 // pred_region
          %v427 = vld [vmem:[%s268] sm:$0xff]
          %v428 = vld [vmem:[%s268 + $0x8] sm:$0xff]
          %v429 = vld [vmem:[%s268 + $0x10] sm:$0xff]
          %v430 = vld [vmem:[%s268 + $0x18] sm:$0xff]
          %v431 = vld [vmem:[%s268 + $0x20] sm:$0xff]
          %v432 = vld [vmem:[%s268 + $0x28] sm:$0xff]
          %v433 = vld [vmem:[%s268 + $0x30] sm:$0xff]
          %v434 = vld [vmem:[%s268 + $0x38] sm:$0xff]
          %v435 = vld [vmem:[%s268 + $0x40] sm:$0xff]
          %v436 = vld [vmem:[%s268 + $0x48] sm:$0xff]
          %v437 = vld [vmem:[%s268 + $0x50] sm:$0xff]
          %v438 = vld [vmem:[%s268 + $0x58] sm:$0xff]
          %v439 = vld [vmem:[%s268 + $0x60] sm:$0xff]
          %v440 = vld [vmem:[%s268 + $0x68] sm:$0xff]
          %v441 = vld [vmem:[%s268 + $0x70] sm:$0xff]
          %v442 = vld [vmem:[%s268 + $0x78] sm:$0xff]
          %v443 = vld [vmem:[%s277] sm:$0xff]
          %v444 = vld [vmem:[%s277 + $0x8] sm:$0xff]
          %v445 = vld [vmem:[%s277 + $0x10] sm:$0xff]
          %v446 = vld [vmem:[%s277 + $0x18] sm:$0xff]
          %v447 = vld [vmem:[%s277 + $0x20] sm:$0xff]
          %v448 = vld [vmem:[%s277 + $0x28] sm:$0xff]
          %v449 = vld [vmem:[%s277 + $0x30] sm:$0xff]
          %v450 = vld [vmem:[%s277 + $0x38] sm:$0xff]
          %v451 = vld [vmem:[%s277 + $0x40] sm:$0xff]
          %v452 = vld [vmem:[%s277 + $0x48] sm:$0xff]
          %v453 = vld [vmem:[%s277 + $0x50] sm:$0xff]
          %v454 = vld [vmem:[%s277 + $0x58] sm:$0xff]
          %v455 = vld [vmem:[%s277 + $0x60] sm:$0xff]
          %v456 = vld [vmem:[%s277 + $0x68] sm:$0xff]
          %v457 = vld [vmem:[%s277 + $0x70] sm:$0xff]
          %v458 = vld [vmem:[%s277 + $0x78] sm:$0xff]
          %v459 = vld [vmem:[#allocation2] sm:$0xff]
          %v460 = vld [vmem:[#allocation2 + $0x8] sm:$0xff]
          %v461 = vld [vmem:[#allocation2 + $0x10] sm:$0xff]
          %v462 = vld [vmem:[#allocation2 + $0x18] sm:$0xff]
          %v463 = vld [vmem:[#allocation2 + $0x20] sm:$0xff]
          %v464 = vld [vmem:[#allocation2 + $0x28] sm:$0xff]
          %v465 = vld [vmem:[#allocation2 + $0x30] sm:$0xff]
          %v466 = vld [vmem:[#allocation2 + $0x38] sm:$0xff]
          %v467 = vld [vmem:[#allocation2 + $0x40] sm:$0xff]
          %v468 = vld [vmem:[#allocation2 + $0x48] sm:$0xff]
          %v469 = vld [vmem:[#allocation2 + $0x50] sm:$0xff]
          %v470 = vld [vmem:[#allocation2 + $0x58] sm:$0xff]
          %v471 = vld [vmem:[#allocation2 + $0x60] sm:$0xff]
          %v472 = vld [vmem:[#allocation2 + $0x68] sm:$0xff]
          %v473 = vld [vmem:[#allocation2 + $0x70] sm:$0xff]
          %v474 = vld [vmem:[#allocation2 + $0x78] sm:$0xff]
          %475 = vmatprep.subr.mxu0 0.0
          %476 = vmatpush1.msra.mxu0 %v458
          %477 = vmatprep.subr.mxu0 0.0
          %478 = vmatpush1.msra.mxu0 %v457
          %479 = vmatprep.subr.mxu0 0.0
          %480 = vmatpush1.msra.mxu0 %v456
          %481 = vmatprep.subr.mxu0 0.0
          %482 = vmatpush1.msra.mxu0 %v455
          %483 = vmatprep.subr.mxu0 0.0
          %484 = vmatpush1.msra.mxu0 %v454
          %485 = vmatprep.subr.mxu0 0.0
          %486 = vmatpush1.msra.mxu0 %v453
          %487 = vmatprep.subr.mxu0 0.0
          %488 = vmatpush1.msra.mxu0 %v452
          %489 = vmatprep.subr.mxu0 0.0
          %490 = vmatpush1.msra.mxu0 %v451
          %491 = vmatprep.subr.mxu0 0.0
          %492 = vmatpush1.msra.mxu0 %v450
          %493 = vmatprep.subr.mxu0 0.0
          %494 = vmatpush1.msra.mxu0 %v449
          %495 = vmatprep.subr.mxu0 0.0
          %496 = vmatpush1.msra.mxu0 %v448
          %497 = vmatprep.subr.mxu0 0.0
          %498 = vmatpush1.msra.mxu0 %v447
          %499 = vmatprep.subr.mxu0 0.0
          %500 = vmatpush1.msra.mxu0 %v446
          %501 = vmatprep.subr.mxu0 0.0
          %502 = vmatpush1.msra.mxu0 %v445
          %503 = vmatprep.subr.mxu0 0.0
          %504 = vmatpush1.msra.mxu0 %v444
          %505 = vmatprep.subr.mxu0 0.0
          %506 = vmatpush1.msra.mxu0 %v443
          %507 = vmatprep.subr.mxu0 0.0
          %508 = vmatpush2.msra.mxu0 0.0
          %509 = vmatprep.subr.mxu0 0.0
          %510 = vmatpush2.msra.mxu0 0.0
          %511 = vmatprep.subr.mxu0 0.0
          %512 = vmatpush2.msra.mxu0 0.0
          %513 = vmatprep.subr.mxu0 0.0
          %514 = vmatpush2.msra.mxu0 0.0
          %515 = vmatprep.subr.mxu0 0.0
          %516 = vmatpush2.msra.mxu0 0.0
          %517 = vmatprep.subr.mxu0 0.0
          %518 = vmatpush2.msra.mxu0 0.0
          %519 = vmatprep.subr.mxu0 0.0
          %520 = vmatpush2.msra.mxu0 0.0
          %521 = vmatprep.subr.mxu0 0.0
          %522 = vmatpush2.msra.mxu0 0.0
          %523 = vmatprep.subr.mxu0 0.0
          %524 = vmatpush2.msra.mxu0 0.0
          %525 = vmatprep.subr.mxu0 0.0
          %526 = vmatpush2.msra.mxu0 0.0
          %527 = vmatprep.subr.mxu0 0.0
          %528 = vmatpush2.msra.mxu0 0.0
          %529 = vmatprep.subr.mxu0 0.0
          %530 = vmatpush2.msra.mxu0 0.0
          %531 = vmatprep.subr.mxu0 0.0
          %532 = vmatpush2.msra.mxu0 0.0
          %533 = vmatprep.subr.mxu0 0.0
          %534 = vmatpush2.msra.mxu0 0.0
          %535 = vmatprep.subr.mxu0 0.0
          %536 = vmatpush2.msra.mxu0 0.0
          %537 = vmatprep.subr.mxu0 0.0
          %538 = vmatpush2.msra.mxu0 0.0
          %539 = vmatprep.mubr.f32.mxu0 0.0
          %540 = vmatmul.mubr.f32.gmra.mxu0 %v427
          %v541 = vpop.f32.mrf.mxu0
          %v542 = vadd.f32 0.0, %v541
          %v543 = vpop.f32.mrf.mxu0
          %544 = vmatprep.mubr.f32.mxu0 0.0
          %545 = vmatmul.mubr.f32.gmra.mxu0 %v428
          %v546 = vpop.f32.mrf.mxu0
          %v547 = vadd.f32 0.0, %v546
          %v548 = vpop.f32.mrf.mxu0
          %549 = vmatprep.mubr.f32.mxu0 0.0
          %550 = vmatmul.mubr.f32.gmra.mxu0 %v429
          %v551 = vpop.f32.mrf.mxu0
          %v552 = vadd.f32 0.0, %v551
          %v553 = vpop.f32.mrf.mxu0
          %554 = vmatprep.mubr.f32.mxu0 0.0
          %555 = vmatmul.mubr.f32.gmra.mxu0 %v430
          %v556 = vpop.f32.mrf.mxu0
          %v557 = vadd.f32 0.0, %v556
          %v558 = vpop.f32.mrf.mxu0
          %559 = vmatprep.mubr.f32.mxu0 0.0
          %560 = vmatmul.mubr.f32.gmra.mxu0 %v431
          %v561 = vpop.f32.mrf.mxu0
          %v562 = vadd.f32 0.0, %v561
          %v563 = vpop.f32.mrf.mxu0
          %564 = vmatprep.mubr.f32.mxu0 0.0
          %565 = vmatmul.mubr.f32.gmra.mxu0 %v432
          %v566 = vpop.f32.mrf.mxu0
          %v567 = vadd.f32 0.0, %v566
          %v568 = vpop.f32.mrf.mxu0
          %569 = vmatprep.mubr.f32.mxu0 0.0
          %570 = vmatmul.mubr.f32.gmra.mxu0 %v433
          %v571 = vpop.f32.mrf.mxu0
          %v572 = vadd.f32 0.0, %v571
          %v573 = vpop.f32.mrf.mxu0
          %574 = vmatprep.mubr.f32.mxu0 0.0
          %575 = vmatmul.mubr.f32.gmra.mxu0 %v434
          %v576 = vpop.f32.mrf.mxu0
          %v577 = vadd.f32 0.0, %v576
          %v578 = vpop.f32.mrf.mxu0
          %579 = vmatprep.mubr.f32.mxu0 0.0
          %580 = vmatmul.mubr.f32.gmra.mxu0 %v435
          %v581 = vpop.f32.mrf.mxu0
          %v582 = vadd.f32 0.0, %v581
          %v583 = vpop.f32.mrf.mxu0
          %584 = vmatprep.mubr.f32.mxu0 0.0
          %585 = vmatmul.mubr.f32.gmra.mxu0 %v436
          %v586 = vpop.f32.mrf.mxu0
          %v587 = vadd.f32 0.0, %v586
          %v588 = vpop.f32.mrf.mxu0
          %589 = vmatprep.mubr.f32.mxu0 0.0
          %590 = vmatmul.mubr.f32.gmra.mxu0 %v437
          %v591 = vpop.f32.mrf.mxu0
          %v592 = vadd.f32 0.0, %v591
          %v593 = vpop.f32.mrf.mxu0
          %594 = vmatprep.mubr.f32.mxu0 0.0
          %595 = vmatmul.mubr.f32.gmra.mxu0 %v438
          %v596 = vpop.f32.mrf.mxu0
          %v597 = vadd.f32 0.0, %v596
          %v598 = vpop.f32.mrf.mxu0
          %599 = vmatprep.mubr.f32.mxu0 0.0
          %600 = vmatmul.mubr.f32.gmra.mxu0 %v439
          %v601 = vpop.f32.mrf.mxu0
          %v602 = vadd.f32 0.0, %v601
          %v603 = vpop.f32.mrf.mxu0
          %604 = vmatprep.mubr.f32.mxu0 0.0
          %605 = vmatmul.mubr.f32.gmra.mxu0 %v440
          %v606 = vpop.f32.mrf.mxu0
          %v607 = vadd.f32 0.0, %v606
          %v608 = vpop.f32.mrf.mxu0
          %609 = vmatprep.mubr.f32.mxu0 0.0
          %610 = vmatmul.mubr.f32.gmra.mxu0 %v441
          %v611 = vpop.f32.mrf.mxu0
          %v612 = vadd.f32 0.0, %v611
          %v613 = vpop.f32.mrf.mxu0
          %614 = vmatprep.mubr.f32.mxu0 0.0
          %615 = vmatmul.mubr.f32.gmra.mxu0 %v442
          %v616 = vpop.f32.mrf.mxu0
          %v617 = vadd.f32 0.0, %v616
          %v618 = vpop.f32.mrf.mxu0
          %619 = vdwg.mxu0
          %v620 = vadd.f32 %v459, %v542
          %v621 = vadd.f32 %v460, %v547
          %v622 = vadd.f32 %v461, %v552
          %v623 = vadd.f32 %v462, %v557
          %v624 = vadd.f32 %v463, %v562
          %v625 = vadd.f32 %v464, %v567
          %v626 = vadd.f32 %v465, %v572
          %v627 = vadd.f32 %v466, %v577
          %v628 = vadd.f32 %v467, %v582
          %v629 = vadd.f32 %v468, %v587
          %v630 = vadd.f32 %v469, %v592
          %v631 = vadd.f32 %v470, %v597
          %v632 = vadd.f32 %v471, %v602
          %v633 = vadd.f32 %v472, %v607
          %v634 = vadd.f32 %v473, %v612
          %v635 = vadd.f32 %v474, %v617
          %636 = vst [vmem:[#allocation2] sm:$0xff] %v620
          %637 = vst [vmem:[#allocation2 + $0x8] sm:$0xff] %v621
          %638 = vst [vmem:[#allocation2 + $0x10] sm:$0xff] %v622
          %639 = vst [vmem:[#allocation2 + $0x18] sm:$0xff] %v623
          %640 = vst [vmem:[#allocation2 + $0x20] sm:$0xff] %v624
          %641 = vst [vmem:[#allocation2 + $0x28] sm:$0xff] %v625
          %642 = vst [vmem:[#allocation2 + $0x30] sm:$0xff] %v626
          %643 = vst [vmem:[#allocation2 + $0x38] sm:$0xff] %v627
          %644 = vst [vmem:[#allocation2 + $0x40] sm:$0xff] %v628
          %645 = vst [vmem:[#allocation2 + $0x48] sm:$0xff] %v629
          %646 = vst [vmem:[#allocation2 + $0x50] sm:$0xff] %v630
          %647 = vst [vmem:[#allocation2 + $0x58] sm:$0xff] %v631
          %648 = vst [vmem:[#allocation2 + $0x60] sm:$0xff] %v632
          %649 = vst [vmem:[#allocation2 + $0x68] sm:$0xff] %v633
          %650 = vst [vmem:[#allocation2 + $0x70] sm:$0xff] %v634
          %651 = vst [vmem:[#allocation2 + $0x78] sm:$0xff] %v635
          %v652 = vmul.f32 %v443, %v443
          %v653 = vmul.f32 %v444, %v444
          %v654 = vmul.f32 %v445, %v445
          %v655 = vmul.f32 %v446, %v446
          %v656 = vmul.f32 %v447, %v447
          %v657 = vmul.f32 %v448, %v448
          %v658 = vmul.f32 %v449, %v449
          %v659 = vmul.f32 %v450, %v450
          %v660 = vmul.f32 %v451, %v451
          %v661 = vmul.f32 %v452, %v452
          %v662 = vmul.f32 %v453, %v453
          %v663 = vmul.f32 %v454, %v454
          %v664 = vmul.f32 %v455, %v455
          %v665 = vmul.f32 %v456, %v456
          %v666 = vmul.f32 %v457, %v457
          %v667 = vmul.f32 %v458, %v458
          %s668 = scalar_lea.vmem [#allocation2], 128
          %v669 = vld [vmem:[%s668] sm:$0xff]
          %v670 = vld [vmem:[%s668 + $0x8] sm:$0xff]
          %v671 = vld [vmem:[%s668 + $0x10] sm:$0xff]
          %v672 = vld [vmem:[%s668 + $0x18] sm:$0xff]
          %v673 = vld [vmem:[%s668 + $0x20] sm:$0xff]
          %v674 = vld [vmem:[%s668 + $0x28] sm:$0xff]
          %v675 = vld [vmem:[%s668 + $0x30] sm:$0xff]
          %v676 = vld [vmem:[%s668 + $0x38] sm:$0xff]
          %v677 = vld [vmem:[%s668 + $0x40] sm:$0xff]
          %v678 = vld [vmem:[%s668 + $0x48] sm:$0xff]
          %v679 = vld [vmem:[%s668 + $0x50] sm:$0xff]
          %v680 = vld [vmem:[%s668 + $0x58] sm:$0xff]
          %v681 = vld [vmem:[%s668 + $0x60] sm:$0xff]
          %v682 = vld [vmem:[%s668 + $0x68] sm:$0xff]
          %v683 = vld [vmem:[%s668 + $0x70] sm:$0xff]
          %v684 = vld [vmem:[%s668 + $0x78] sm:$0xff]
          %685 = vmatprep.subr.mxu0 0.0
          %686 = vmatpush1.msra.mxu0 %v667
          %687 = vmatprep.subr.mxu0 0.0
          %688 = vmatpush1.msra.mxu0 %v666
          %689 = vmatprep.subr.mxu0 0.0
          %690 = vmatpush1.msra.mxu0 %v665
          %691 = vmatprep.subr.mxu0 0.0
          %692 = vmatpush1.msra.mxu0 %v664
          %693 = vmatprep.subr.mxu0 0.0
          %694 = vmatpush1.msra.mxu0 %v663
          %695 = vmatprep.subr.mxu0 0.0
          %696 = vmatpush1.msra.mxu0 %v662
          %697 = vmatprep.subr.mxu0 0.0
          %698 = vmatpush1.msra.mxu0 %v661
          %699 = vmatprep.subr.mxu0 0.0
          %700 = vmatpush1.msra.mxu0 %v660
          %701 = vmatprep.subr.mxu0 0.0
          %702 = vmatpush1.msra.mxu0 %v659
          %703 = vmatprep.subr.mxu0 0.0
          %704 = vmatpush1.msra.mxu0 %v658
          %705 = vmatprep.subr.mxu0 0.0
          %706 = vmatpush1.msra.mxu0 %v657
          %707 = vmatprep.subr.mxu0 0.0
          %708 = vmatpush1.msra.mxu0 %v656
          %709 = vmatprep.subr.mxu0 0.0
          %710 = vmatpush1.msra.mxu0 %v655
          %711 = vmatprep.subr.mxu0 0.0
          %712 = vmatpush1.msra.mxu0 %v654
          %713 = vmatprep.subr.mxu0 0.0
          %714 = vmatpush1.msra.mxu0 %v653
          %715 = vmatprep.subr.mxu0 0.0
          %716 = vmatpush1.msra.mxu0 %v652
          %717 = vmatprep.subr.mxu0 0.0
          %718 = vmatpush2.msra.mxu0 0.0
          %719 = vmatprep.subr.mxu0 0.0
          %720 = vmatpush2.msra.mxu0 0.0
          %721 = vmatprep.subr.mxu0 0.0
          %722 = vmatpush2.msra.mxu0 0.0
          %723 = vmatprep.subr.mxu0 0.0
          %724 = vmatpush2.msra.mxu0 0.0
          %725 = vmatprep.subr.mxu0 0.0
          %726 = vmatpush2.msra.mxu0 0.0
          %727 = vmatprep.subr.mxu0 0.0
          %728 = vmatpush2.msra.mxu0 0.0
          %729 = vmatprep.subr.mxu0 0.0
          %730 = vmatpush2.msra.mxu0 0.0
          %731 = vmatprep.subr.mxu0 0.0
          %732 = vmatpush2.msra.mxu0 0.0
          %733 = vmatprep.subr.mxu0 0.0
          %734 = vmatpush2.msra.mxu0 0.0
          %735 = vmatprep.subr.mxu0 0.0
          %736 = vmatpush2.msra.mxu0 0.0
          %737 = vmatprep.subr.mxu0 0.0
          %738 = vmatpush2.msra.mxu0 0.0
          %739 = vmatprep.subr.mxu0 0.0
          %740 = vmatpush2.msra.mxu0 0.0
          %741 = vmatprep.subr.mxu0 0.0
          %742 = vmatpush2.msra.mxu0 0.0
          %743 = vmatprep.subr.mxu0 0.0
          %744 = vmatpush2.msra.mxu0 0.0
          %745 = vmatprep.subr.mxu0 0.0
          %746 = vmatpush2.msra.mxu0 0.0
          %747 = vmatprep.subr.mxu0 0.0
          %748 = vmatpush2.msra.mxu0 0.0
          %749 = vmatprep.mubr.f32.mxu0 0.0
          %750 = vmatmul.mubr.f32.gmra.mxu0 %v427
          %v751 = vpop.f32.mrf.mxu0
          %v752 = vadd.f32 0.0, %v751
          %v753 = vpop.f32.mrf.mxu0
          %754 = vmatprep.mubr.f32.mxu0 0.0
          %755 = vmatmul.mubr.f32.gmra.mxu0 %v428
          %v756 = vpop.f32.mrf.mxu0
          %v757 = vadd.f32 0.0, %v756
          %v758 = vpop.f32.mrf.mxu0
          %759 = vmatprep.mubr.f32.mxu0 0.0
          %760 = vmatmul.mubr.f32.gmra.mxu0 %v429
          %v761 = vpop.f32.mrf.mxu0
          %v762 = vadd.f32 0.0, %v761
          %v763 = vpop.f32.mrf.mxu0
          %764 = vmatprep.mubr.f32.mxu0 0.0
          %765 = vmatmul.mubr.f32.gmra.mxu0 %v430
          %v766 = vpop.f32.mrf.mxu0
          %v767 = vadd.f32 0.0, %v766
          %v768 = vpop.f32.mrf.mxu0
          %769 = vmatprep.mubr.f32.mxu0 0.0
          %770 = vmatmul.mubr.f32.gmra.mxu0 %v431
          %v771 = vpop.f32.mrf.mxu0
          %v772 = vadd.f32 0.0, %v771
          %v773 = vpop.f32.mrf.mxu0
          %774 = vmatprep.mubr.f32.mxu0 0.0
          %775 = vmatmul.mubr.f32.gmra.mxu0 %v432
          %v776 = vpop.f32.mrf.mxu0
          %v777 = vadd.f32 0.0, %v776
          %v778 = vpop.f32.mrf.mxu0
          %779 = vmatprep.mubr.f32.mxu0 0.0
          %780 = vmatmul.mubr.f32.gmra.mxu0 %v433
          %v781 = vpop.f32.mrf.mxu0
          %v782 = vadd.f32 0.0, %v781
          %v783 = vpop.f32.mrf.mxu0
          %784 = vmatprep.mubr.f32.mxu0 0.0
          %785 = vmatmul.mubr.f32.gmra.mxu0 %v434
          %v786 = vpop.f32.mrf.mxu0
          %v787 = vadd.f32 0.0, %v786
          %v788 = vpop.f32.mrf.mxu0
          %789 = vmatprep.mubr.f32.mxu0 0.0
          %790 = vmatmul.mubr.f32.gmra.mxu0 %v435
          %v791 = vpop.f32.mrf.mxu0
          %v792 = vadd.f32 0.0, %v791
          %v793 = vpop.f32.mrf.mxu0
          %794 = vmatprep.mubr.f32.mxu0 0.0
          %795 = vmatmul.mubr.f32.gmra.mxu0 %v436
          %v796 = vpop.f32.mrf.mxu0
          %v797 = vadd.f32 0.0, %v796
          %v798 = vpop.f32.mrf.mxu0
          %799 = vmatprep.mubr.f32.mxu0 0.0
          %800 = vmatmul.mubr.f32.gmra.mxu0 %v437
          %v801 = vpop.f32.mrf.mxu0
          %v802 = vadd.f32 0.0, %v801
          %v803 = vpop.f32.mrf.mxu0
          %804 = vmatprep.mubr.f32.mxu0 0.0
          %805 = vmatmul.mubr.f32.gmra.mxu0 %v438
          %v806 = vpop.f32.mrf.mxu0
          %v807 = vadd.f32 0.0, %v806
          %v808 = vpop.f32.mrf.mxu0
          %809 = vmatprep.mubr.f32.mxu0 0.0
          %810 = vmatmul.mubr.f32.gmra.mxu0 %v439
          %v811 = vpop.f32.mrf.mxu0
          %v812 = vadd.f32 0.0, %v811
          %v813 = vpop.f32.mrf.mxu0
          %814 = vmatprep.mubr.f32.mxu0 0.0
          %815 = vmatmul.mubr.f32.gmra.mxu0 %v440
          %v816 = vpop.f32.mrf.mxu0
          %v817 = vadd.f32 0.0, %v816
          %v818 = vpop.f32.mrf.mxu0
          %819 = vmatprep.mubr.f32.mxu0 0.0
          %820 = vmatmul.mubr.f32.gmra.mxu0 %v441
          %v821 = vpop.f32.mrf.mxu0
          %v822 = vadd.f32 0.0, %v821
          %v823 = vpop.f32.mrf.mxu0
          %824 = vmatprep.mubr.f32.mxu0 0.0
          %825 = vmatmul.mubr.f32.gmra.mxu0 %v442
          %v826 = vpop.f32.mrf.mxu0
          %v827 = vadd.f32 0.0, %v826
          %v828 = vpop.f32.mrf.mxu0
          %829 = vdwg.mxu0
          %v830 = vadd.f32 %v669, %v752
          %v831 = vadd.f32 %v670, %v757
          %v832 = vadd.f32 %v671, %v762
          %v833 = vadd.f32 %v672, %v767
          %v834 = vadd.f32 %v673, %v772
          %v835 = vadd.f32 %v674, %v777
          %v836 = vadd.f32 %v675, %v782
          %v837 = vadd.f32 %v676, %v787
          %v838 = vadd.f32 %v677, %v792
          %v839 = vadd.f32 %v678, %v797
          %v840 = vadd.f32 %v679, %v802
          %v841 = vadd.f32 %v680, %v807
          %v842 = vadd.f32 %v681, %v812
          %v843 = vadd.f32 %v682, %v817
          %v844 = vadd.f32 %v683, %v822
          %v845 = vadd.f32 %v684, %v827
          %846 = vst [vmem:[%s668] sm:$0xff] %v830
          %847 = vst [vmem:[%s668 + $0x8] sm:$0xff] %v831
          %848 = vst [vmem:[%s668 + $0x10] sm:$0xff] %v832
          %849 = vst [vmem:[%s668 + $0x18] sm:$0xff] %v833
          %850 = vst [vmem:[%s668 + $0x20] sm:$0xff] %v834
          %851 = vst [vmem:[%s668 + $0x28] sm:$0xff] %v835
          %852 = vst [vmem:[%s668 + $0x30] sm:$0xff] %v836
          %853 = vst [vmem:[%s668 + $0x38] sm:$0xff] %v837
          %854 = vst [vmem:[%s668 + $0x40] sm:$0xff] %v838
          %855 = vst [vmem:[%s668 + $0x48] sm:$0xff] %v839
          %856 = vst [vmem:[%s668 + $0x50] sm:$0xff] %v840
          %857 = vst [vmem:[%s668 + $0x58] sm:$0xff] %v841
          %858 = vst [vmem:[%s668 + $0x60] sm:$0xff] %v842
          %859 = vst [vmem:[%s668 + $0x68] sm:$0xff] %v843
          %860 = vst [vmem:[%s668 + $0x70] sm:$0xff] %v844
          %861 = vst [vmem:[%s668 + $0x78] sm:$0xff] %v845
          %v862 = vmul.f32 %v652, %v443
          %v863 = vmul.f32 %v653, %v444
          %v864 = vmul.f32 %v654, %v445
          %v865 = vmul.f32 %v655, %v446
          %v866 = vmul.f32 %v656, %v447
          %v867 = vmul.f32 %v657, %v448
          %v868 = vmul.f32 %v658, %v449
          %v869 = vmul.f32 %v659, %v450
          %v870 = vmul.f32 %v660, %v451
          %v871 = vmul.f32 %v661, %v452
          %v872 = vmul.f32 %v662, %v453
          %v873 = vmul.f32 %v663, %v454
          %v874 = vmul.f32 %v664, %v455
          %v875 = vmul.f32 %v665, %v456
          %v876 = vmul.f32 %v666, %v457
          %v877 = vmul.f32 %v667, %v458
          %s878 = scalar_lea.vmem [#allocation2], 256
          %v879 = vld [vmem:[%s878] sm:$0xff]
          %v880 = vld [vmem:[%s878 + $0x8] sm:$0xff]
          %v881 = vld [vmem:[%s878 + $0x10] sm:$0xff]
          %v882 = vld [vmem:[%s878 + $0x18] sm:$0xff]
          %v883 = vld [vmem:[%s878 + $0x20] sm:$0xff]
          %v884 = vld [vmem:[%s878 + $0x28] sm:$0xff]
          %v885 = vld [vmem:[%s878 + $0x30] sm:$0xff]
          %v886 = vld [vmem:[%s878 + $0x38] sm:$0xff]
          %v887 = vld [vmem:[%s878 + $0x40] sm:$0xff]
          %v888 = vld [vmem:[%s878 + $0x48] sm:$0xff]
          %v889 = vld [vmem:[%s878 + $0x50] sm:$0xff]
          %v890 = vld [vmem:[%s878 + $0x58] sm:$0xff]
          %v891 = vld [vmem:[%s878 + $0x60] sm:$0xff]
          %v892 = vld [vmem:[%s878 + $0x68] sm:$0xff]
          %v893 = vld [vmem:[%s878 + $0x70] sm:$0xff]
          %v894 = vld [vmem:[%s878 + $0x78] sm:$0xff]
          %895 = vmatprep.subr.mxu0 0.0
          %896 = vmatpush1.msra.mxu0 %v877
          %897 = vmatprep.subr.mxu0 0.0
          %898 = vmatpush1.msra.mxu0 %v876
          %899 = vmatprep.subr.mxu0 0.0
          %900 = vmatpush1.msra.mxu0 %v875
          %901 = vmatprep.subr.mxu0 0.0
          %902 = vmatpush1.msra.mxu0 %v874
          %903 = vmatprep.subr.mxu0 0.0
          %904 = vmatpush1.msra.mxu0 %v873
          %905 = vmatprep.subr.mxu0 0.0
          %906 = vmatpush1.msra.mxu0 %v872
          %907 = vmatprep.subr.mxu0 0.0
          %908 = vmatpush1.msra.mxu0 %v871
          %909 = vmatprep.subr.mxu0 0.0
          %910 = vmatpush1.msra.mxu0 %v870
          %911 = vmatprep.subr.mxu0 0.0
          %912 = vmatpush1.msra.mxu0 %v869
          %913 = vmatprep.subr.mxu0 0.0
          %914 = vmatpush1.msra.mxu0 %v868
          %915 = vmatprep.subr.mxu0 0.0
          %916 = vmatpush1.msra.mxu0 %v867
          %917 = vmatprep.subr.mxu0 0.0
          %918 = vmatpush1.msra.mxu0 %v866
          %919 = vmatprep.subr.mxu0 0.0
          %920 = vmatpush1.msra.mxu0 %v865
          %921 = vmatprep.subr.mxu0 0.0
          %922 = vmatpush1.msra.mxu0 %v864
          %923 = vmatprep.subr.mxu0 0.0
          %924 = vmatpush1.msra.mxu0 %v863
          %925 = vmatprep.subr.mxu0 0.0
          %926 = vmatpush1.msra.mxu0 %v862
          %927 = vmatprep.subr.mxu0 0.0
          %928 = vmatpush2.msra.mxu0 0.0
          %929 = vmatprep.subr.mxu0 0.0
          %930 = vmatpush2.msra.mxu0 0.0
          %931 = vmatprep.subr.mxu0 0.0
          %932 = vmatpush2.msra.mxu0 0.0
          %933 = vmatprep.subr.mxu0 0.0
          %934 = vmatpush2.msra.mxu0 0.0
          %935 = vmatprep.subr.mxu0 0.0
          %936 = vmatpush2.msra.mxu0 0.0
          %937 = vmatprep.subr.mxu0 0.0
          %938 = vmatpush2.msra.mxu0 0.0
          %939 = vmatprep.subr.mxu0 0.0
          %940 = vmatpush2.msra.mxu0 0.0
          %941 = vmatprep.subr.mxu0 0.0
          %942 = vmatpush2.msra.mxu0 0.0
          %943 = vmatprep.subr.mxu0 0.0
          %944 = vmatpush2.msra.mxu0 0.0
          %945 = vmatprep.subr.mxu0 0.0
          %946 = vmatpush2.msra.mxu0 0.0
          %947 = vmatprep.subr.mxu0 0.0
          %948 = vmatpush2.msra.mxu0 0.0
          %949 = vmatprep.subr.mxu0 0.0
          %950 = vmatpush2.msra.mxu0 0.0
          %951 = vmatprep.subr.mxu0 0.0
          %952 = vmatpush2.msra.mxu0 0.0
          %953 = vmatprep.subr.mxu0 0.0
          %954 = vmatpush2.msra.mxu0 0.0
          %955 = vmatprep.subr.mxu0 0.0
          %956 = vmatpush2.msra.mxu0 0.0
          %957 = vmatprep.subr.mxu0 0.0
          %958 = vmatpush2.msra.mxu0 0.0
          %959 = vmatprep.mubr.f32.mxu0 0.0
          %960 = vmatmul.mubr.f32.gmra.mxu0 %v427
          %v961 = vpop.f32.mrf.mxu0
          %v962 = vadd.f32 0.0, %v961
          %v963 = vpop.f32.mrf.mxu0
          %964 = vmatprep.mubr.f32.mxu0 0.0
          %965 = vmatmul.mubr.f32.gmra.mxu0 %v428
          %v966 = vpop.f32.mrf.mxu0
          %v967 = vadd.f32 0.0, %v966
          %v968 = vpop.f32.mrf.mxu0
          %969 = vmatprep.mubr.f32.mxu0 0.0
          %970 = vmatmul.mubr.f32.gmra.mxu0 %v429
          %v971 = vpop.f32.mrf.mxu0
          %v972 = vadd.f32 0.0, %v971
          %v973 = vpop.f32.mrf.mxu0
          %974 = vmatprep.mubr.f32.mxu0 0.0
          %975 = vmatmul.mubr.f32.gmra.mxu0 %v430
          %v976 = vpop.f32.mrf.mxu0
          %v977 = vadd.f32 0.0, %v976
          %v978 = vpop.f32.mrf.mxu0
          %979 = vmatprep.mubr.f32.mxu0 0.0
          %980 = vmatmul.mubr.f32.gmra.mxu0 %v431
          %v981 = vpop.f32.mrf.mxu0
          %v982 = vadd.f32 0.0, %v981
          %v983 = vpop.f32.mrf.mxu0
          %984 = vmatprep.mubr.f32.mxu0 0.0
          %985 = vmatmul.mubr.f32.gmra.mxu0 %v432
          %v986 = vpop.f32.mrf.mxu0
          %v987 = vadd.f32 0.0, %v986
          %v988 = vpop.f32.mrf.mxu0
          %989 = vmatprep.mubr.f32.mxu0 0.0
          %990 = vmatmul.mubr.f32.gmra.mxu0 %v433
          %v991 = vpop.f32.mrf.mxu0
          %v992 = vadd.f32 0.0, %v991
          %v993 = vpop.f32.mrf.mxu0
          %994 = vmatprep.mubr.f32.mxu0 0.0
          %995 = vmatmul.mubr.f32.gmra.mxu0 %v434
          %v996 = vpop.f32.mrf.mxu0
          %v997 = vadd.f32 0.0, %v996
          %v998 = vpop.f32.mrf.mxu0
          %999 = vmatprep.mubr.f32.mxu0 0.0
          %1000 = vmatmul.mubr.f32.gmra.mxu0 %v435
          %v1001 = vpop.f32.mrf.mxu0
          %v1002 = vadd.f32 0.0, %v1001
          %v1003 = vpop.f32.mrf.mxu0
          %1004 = vmatprep.mubr.f32.mxu0 0.0
          %1005 = vmatmul.mubr.f32.gmra.mxu0 %v436
          %v1006 = vpop.f32.mrf.mxu0
          %v1007 = vadd.f32 0.0, %v1006
          %v1008 = vpop.f32.mrf.mxu0
          %1009 = vmatprep.mubr.f32.mxu0 0.0
          %1010 = vmatmul.mubr.f32.gmra.mxu0 %v437
          %v1011 = vpop.f32.mrf.mxu0
          %v1012 = vadd.f32 0.0, %v1011
          %v1013 = vpop.f32.mrf.mxu0
          %1014 = vmatprep.mubr.f32.mxu0 0.0
          %1015 = vmatmul.mubr.f32.gmra.mxu0 %v438
          %v1016 = vpop.f32.mrf.mxu0
          %v1017 = vadd.f32 0.0, %v1016
          %v1018 = vpop.f32.mrf.mxu0
          %1019 = vmatprep.mubr.f32.mxu0 0.0
          %1020 = vmatmul.mubr.f32.gmra.mxu0 %v439
          %v1021 = vpop.f32.mrf.mxu0
          %v1022 = vadd.f32 0.0, %v1021
          %v1023 = vpop.f32.mrf.mxu0
          %1024 = vmatprep.mubr.f32.mxu0 0.0
          %1025 = vmatmul.mubr.f32.gmra.mxu0 %v440
          %v1026 = vpop.f32.mrf.mxu0
          %v1027 = vadd.f32 0.0, %v1026
          %v1028 = vpop.f32.mrf.mxu0
          %1029 = vmatprep.mubr.f32.mxu0 0.0
          %1030 = vmatmul.mubr.f32.gmra.mxu0 %v441
          %v1031 = vpop.f32.mrf.mxu0
          %v1032 = vadd.f32 0.0, %v1031
          %v1033 = vpop.f32.mrf.mxu0
          %1034 = vmatprep.mubr.f32.mxu0 0.0
          %1035 = vmatmul.mubr.f32.gmra.mxu0 %v442
          %v1036 = vpop.f32.mrf.mxu0
          %v1037 = vadd.f32 0.0, %v1036
          %v1038 = vpop.f32.mrf.mxu0
          %1039 = vdwg.mxu0
          %v1040 = vadd.f32 %v879, %v962
          %v1041 = vadd.f32 %v880, %v967
          %v1042 = vadd.f32 %v881, %v972
          %v1043 = vadd.f32 %v882, %v977
          %v1044 = vadd.f32 %v883, %v982
          %v1045 = vadd.f32 %v884, %v987
          %v1046 = vadd.f32 %v885, %v992
          %v1047 = vadd.f32 %v886, %v997
          %v1048 = vadd.f32 %v887, %v1002
          %v1049 = vadd.f32 %v888, %v1007
          %v1050 = vadd.f32 %v889, %v1012
          %v1051 = vadd.f32 %v890, %v1017
          %v1052 = vadd.f32 %v891, %v1022
          %v1053 = vadd.f32 %v892, %v1027
          %v1054 = vadd.f32 %v893, %v1032
          %v1055 = vadd.f32 %v894, %v1037
          %1056 = vst [vmem:[%s878] sm:$0xff] %v1040
          %1057 = vst [vmem:[%s878 + $0x8] sm:$0xff] %v1041
          %1058 = vst [vmem:[%s878 + $0x10] sm:$0xff] %v1042
          %1059 = vst [vmem:[%s878 + $0x18] sm:$0xff] %v1043
          %1060 = vst [vmem:[%s878 + $0x20] sm:$0xff] %v1044
          %1061 = vst [vmem:[%s878 + $0x28] sm:$0xff] %v1045
          %1062 = vst [vmem:[%s878 + $0x30] sm:$0xff] %v1046
          %1063 = vst [vmem:[%s878 + $0x38] sm:$0xff] %v1047
          %1064 = vst [vmem:[%s878 + $0x40] sm:$0xff] %v1048
          %1065 = vst [vmem:[%s878 + $0x48] sm:$0xff] %v1049
          %1066 = vst [vmem:[%s878 + $0x50] sm:$0xff] %v1050
          %1067 = vst [vmem:[%s878 + $0x58] sm:$0xff] %v1051
          %1068 = vst [vmem:[%s878 + $0x60] sm:$0xff] %v1052
          %1069 = vst [vmem:[%s878 + $0x68] sm:$0xff] %v1053
          %1070 = vst [vmem:[%s878 + $0x70] sm:$0xff] %v1054
          %1071 = vst [vmem:[%s878 + $0x78] sm:$0xff] %v1055
          %v1072 = vmul.f32 %v862, %v443
          %v1073 = vmul.f32 %v863, %v444
          %v1074 = vmul.f32 %v864, %v445
          %v1075 = vmul.f32 %v865, %v446
          %v1076 = vmul.f32 %v866, %v447
          %v1077 = vmul.f32 %v867, %v448
          %v1078 = vmul.f32 %v868, %v449
          %v1079 = vmul.f32 %v869, %v450
          %v1080 = vmul.f32 %v870, %v451
          %v1081 = vmul.f32 %v871, %v452
          %v1082 = vmul.f32 %v872, %v453
          %v1083 = vmul.f32 %v873, %v454
          %v1084 = vmul.f32 %v874, %v455
          %v1085 = vmul.f32 %v875, %v456
          %v1086 = vmul.f32 %v876, %v457
          %v1087 = vmul.f32 %v877, %v458
          %s1088 = scalar_lea.vmem [#allocation2], 384
          %v1089 = vld [vmem:[%s1088] sm:$0xff]
          %v1090 = vld [vmem:[%s1088 + $0x8] sm:$0xff]
          %v1091 = vld [vmem:[%s1088 + $0x10] sm:$0xff]
          %v1092 = vld [vmem:[%s1088 + $0x18] sm:$0xff]
          %v1093 = vld [vmem:[%s1088 + $0x20] sm:$0xff]
          %v1094 = vld [vmem:[%s1088 + $0x28] sm:$0xff]
          %v1095 = vld [vmem:[%s1088 + $0x30] sm:$0xff]
          %v1096 = vld [vmem:[%s1088 + $0x38] sm:$0xff]
          %v1097 = vld [vmem:[%s1088 + $0x40] sm:$0xff]
          %v1098 = vld [vmem:[%s1088 + $0x48] sm:$0xff]
          %v1099 = vld [vmem:[%s1088 + $0x50] sm:$0xff]
          %v1100 = vld [vmem:[%s1088 + $0x58] sm:$0xff]
          %v1101 = vld [vmem:[%s1088 + $0x60] sm:$0xff]
          %v1102 = vld [vmem:[%s1088 + $0x68] sm:$0xff]
          %v1103 = vld [vmem:[%s1088 + $0x70] sm:$0xff]
          %v1104 = vld [vmem:[%s1088 + $0x78] sm:$0xff]
          %1105 = vmatprep.subr.mxu0 0.0
          %1106 = vmatpush1.msra.mxu0 %v1087
          %1107 = vmatprep.subr.mxu0 0.0
          %1108 = vmatpush1.msra.mxu0 %v1086
          %1109 = vmatprep.subr.mxu0 0.0
          %1110 = vmatpush1.msra.mxu0 %v1085
          %1111 = vmatprep.subr.mxu0 0.0
          %1112 = vmatpush1.msra.mxu0 %v1084
          %1113 = vmatprep.subr.mxu0 0.0
          %1114 = vmatpush1.msra.mxu0 %v1083
          %1115 = vmatprep.subr.mxu0 0.0
          %1116 = vmatpush1.msra.mxu0 %v1082
          %1117 = vmatprep.subr.mxu0 0.0
          %1118 = vmatpush1.msra.mxu0 %v1081
          %1119 = vmatprep.subr.mxu0 0.0
          %1120 = vmatpush1.msra.mxu0 %v1080
          %1121 = vmatprep.subr.mxu0 0.0
          %1122 = vmatpush1.msra.mxu0 %v1079
          %1123 = vmatprep.subr.mxu0 0.0
          %1124 = vmatpush1.msra.mxu0 %v1078
          %1125 = vmatprep.subr.mxu0 0.0
          %1126 = vmatpush1.msra.mxu0 %v1077
          %1127 = vmatprep.subr.mxu0 0.0
          %1128 = vmatpush1.msra.mxu0 %v1076
          %1129 = vmatprep.subr.mxu0 0.0
          %1130 = vmatpush1.msra.mxu0 %v1075
          %1131 = vmatprep.subr.mxu0 0.0
          %1132 = vmatpush1.msra.mxu0 %v1074
          %1133 = vmatprep.subr.mxu0 0.0
          %1134 = vmatpush1.msra.mxu0 %v1073
          %1135 = vmatprep.subr.mxu0 0.0
          %1136 = vmatpush1.msra.mxu0 %v1072
          %1137 = vmatprep.subr.mxu0 0.0
          %1138 = vmatpush2.msra.mxu0 0.0
          %1139 = vmatprep.subr.mxu0 0.0
          %1140 = vmatpush2.msra.mxu0 0.0
          %1141 = vmatprep.subr.mxu0 0.0
          %1142 = vmatpush2.msra.mxu0 0.0
          %1143 = vmatprep.subr.mxu0 0.0
          %1144 = vmatpush2.msra.mxu0 0.0
          %1145 = vmatprep.subr.mxu0 0.0
          %1146 = vmatpush2.msra.mxu0 0.0
          %1147 = vmatprep.subr.mxu0 0.0
          %1148 = vmatpush2.msra.mxu0 0.0
          %1149 = vmatprep.subr.mxu0 0.0
          %1150 = vmatpush2.msra.mxu0 0.0
          %1151 = vmatprep.subr.mxu0 0.0
          %1152 = vmatpush2.msra.mxu0 0.0
          %1153 = vmatprep.subr.mxu0 0.0
          %1154 = vmatpush2.msra.mxu0 0.0
          %1155 = vmatprep.subr.mxu0 0.0
          %1156 = vmatpush2.msra.mxu0 0.0
          %1157 = vmatprep.subr.mxu0 0.0
          %1158 = vmatpush2.msra.mxu0 0.0
          %1159 = vmatprep.subr.mxu0 0.0
          %1160 = vmatpush2.msra.mxu0 0.0
          %1161 = vmatprep.subr.mxu0 0.0
          %1162 = vmatpush2.msra.mxu0 0.0
          %1163 = vmatprep.subr.mxu0 0.0
          %1164 = vmatpush2.msra.mxu0 0.0
          %1165 = vmatprep.subr.mxu0 0.0
          %1166 = vmatpush2.msra.mxu0 0.0
          %1167 = vmatprep.subr.mxu0 0.0
          %1168 = vmatpush2.msra.mxu0 0.0
          %1169 = vmatprep.mubr.f32.mxu0 0.0
          %1170 = vmatmul.mubr.f32.gmra.mxu0 %v427
          %v1171 = vpop.f32.mrf.mxu0
          %v1172 = vadd.f32 0.0, %v1171
          %v1173 = vpop.f32.mrf.mxu0
          %1174 = vmatprep.mubr.f32.mxu0 0.0
          %1175 = vmatmul.mubr.f32.gmra.mxu0 %v428
          %v1176 = vpop.f32.mrf.mxu0
          %v1177 = vadd.f32 0.0, %v1176
          %v1178 = vpop.f32.mrf.mxu0
          %1179 = vmatprep.mubr.f32.mxu0 0.0
          %1180 = vmatmul.mubr.f32.gmra.mxu0 %v429
          %v1181 = vpop.f32.mrf.mxu0
          %v1182 = vadd.f32 0.0, %v1181
          %v1183 = vpop.f32.mrf.mxu0
          %1184 = vmatprep.mubr.f32.mxu0 0.0
          %1185 = vmatmul.mubr.f32.gmra.mxu0 %v430
          %v1186 = vpop.f32.mrf.mxu0
          %v1187 = vadd.f32 0.0, %v1186
          %v1188 = vpop.f32.mrf.mxu0
          %1189 = vmatprep.mubr.f32.mxu0 0.0
          %1190 = vmatmul.mubr.f32.gmra.mxu0 %v431
          %v1191 = vpop.f32.mrf.mxu0
          %v1192 = vadd.f32 0.0, %v1191
          %v1193 = vpop.f32.mrf.mxu0
          %1194 = vmatprep.mubr.f32.mxu0 0.0
          %1195 = vmatmul.mubr.f32.gmra.mxu0 %v432
          %v1196 = vpop.f32.mrf.mxu0
          %v1197 = vadd.f32 0.0, %v1196
          %v1198 = vpop.f32.mrf.mxu0
          %1199 = vmatprep.mubr.f32.mxu0 0.0
          %1200 = vmatmul.mubr.f32.gmra.mxu0 %v433
          %v1201 = vpop.f32.mrf.mxu0
          %v1202 = vadd.f32 0.0, %v1201
          %v1203 = vpop.f32.mrf.mxu0
          %1204 = vmatprep.mubr.f32.mxu0 0.0
          %1205 = vmatmul.mubr.f32.gmra.mxu0 %v434
          %v1206 = vpop.f32.mrf.mxu0
          %v1207 = vadd.f32 0.0, %v1206
          %v1208 = vpop.f32.mrf.mxu0
          %1209 = vmatprep.mubr.f32.mxu0 0.0
          %1210 = vmatmul.mubr.f32.gmra.mxu0 %v435
          %v1211 = vpop.f32.mrf.mxu0
          %v1212 = vadd.f32 0.0, %v1211
          %v1213 = vpop.f32.mrf.mxu0
          %1214 = vmatprep.mubr.f32.mxu0 0.0
          %1215 = vmatmul.mubr.f32.gmra.mxu0 %v436
          %v1216 = vpop.f32.mrf.mxu0
          %v1217 = vadd.f32 0.0, %v1216
          %v1218 = vpop.f32.mrf.mxu0
          %1219 = vmatprep.mubr.f32.mxu0 0.0
          %1220 = vmatmul.mubr.f32.gmra.mxu0 %v437
          %v1221 = vpop.f32.mrf.mxu0
          %v1222 = vadd.f32 0.0, %v1221
          %v1223 = vpop.f32.mrf.mxu0
          %1224 = vmatprep.mubr.f32.mxu0 0.0
          %1225 = vmatmul.mubr.f32.gmra.mxu0 %v438
          %v1226 = vpop.f32.mrf.mxu0
          %v1227 = vadd.f32 0.0, %v1226
          %v1228 = vpop.f32.mrf.mxu0
          %1229 = vmatprep.mubr.f32.mxu0 0.0
          %1230 = vmatmul.mubr.f32.gmra.mxu0 %v439
          %v1231 = vpop.f32.mrf.mxu0
          %v1232 = vadd.f32 0.0, %v1231
          %v1233 = vpop.f32.mrf.mxu0
          %1234 = vmatprep.mubr.f32.mxu0 0.0
          %1235 = vmatmul.mubr.f32.gmra.mxu0 %v440
          %v1236 = vpop.f32.mrf.mxu0
          %v1237 = vadd.f32 0.0, %v1236
          %v1238 = vpop.f32.mrf.mxu0
          %1239 = vmatprep.mubr.f32.mxu0 0.0
          %1240 = vmatmul.mubr.f32.gmra.mxu0 %v441
          %v1241 = vpop.f32.mrf.mxu0
          %v1242 = vadd.f32 0.0, %v1241
          %v1243 = vpop.f32.mrf.mxu0
          %1244 = vmatprep.mubr.f32.mxu0 0.0
          %1245 = vmatmul.mubr.f32.gmra.mxu0 %v442
          %v1246 = vpop.f32.mrf.mxu0
          %v1247 = vadd.f32 0.0, %v1246
          %v1248 = vpop.f32.mrf.mxu0
          %1249 = vdwg.mxu0
          %v1250 = vadd.f32 %v1089, %v1172
          %v1251 = vadd.f32 %v1090, %v1177
          %v1252 = vadd.f32 %v1091, %v1182
          %v1253 = vadd.f32 %v1092, %v1187
          %v1254 = vadd.f32 %v1093, %v1192
          %v1255 = vadd.f32 %v1094, %v1197
          %v1256 = vadd.f32 %v1095, %v1202
          %v1257 = vadd.f32 %v1096, %v1207
          %v1258 = vadd.f32 %v1097, %v1212
          %v1259 = vadd.f32 %v1098, %v1217
          %v1260 = vadd.f32 %v1099, %v1222
          %v1261 = vadd.f32 %v1100, %v1227
          %v1262 = vadd.f32 %v1101, %v1232
          %v1263 = vadd.f32 %v1102, %v1237
          %v1264 = vadd.f32 %v1103, %v1242
          %v1265 = vadd.f32 %v1104, %v1247
          %1266 = vst [vmem:[%s1088] sm:$0xff] %v1250
          %1267 = vst [vmem:[%s1088 + $0x8] sm:$0xff] %v1251
          %1268 = vst [vmem:[%s1088 + $0x10] sm:$0xff] %v1252
          %1269 = vst [vmem:[%s1088 + $0x18] sm:$0xff] %v1253
          %1270 = vst [vmem:[%s1088 + $0x20] sm:$0xff] %v1254
          %1271 = vst [vmem:[%s1088 + $0x28] sm:$0xff] %v1255
          %1272 = vst [vmem:[%s1088 + $0x30] sm:$0xff] %v1256
          %1273 = vst [vmem:[%s1088 + $0x38] sm:$0xff] %v1257
          %1274 = vst [vmem:[%s1088 + $0x40] sm:$0xff] %v1258
          %1275 = vst [vmem:[%s1088 + $0x48] sm:$0xff] %v1259
          %1276 = vst [vmem:[%s1088 + $0x50] sm:$0xff] %v1260
          %1277 = vst [vmem:[%s1088 + $0x58] sm:$0xff] %v1261
          %1278 = vst [vmem:[%s1088 + $0x60] sm:$0xff] %v1262
          %1279 = vst [vmem:[%s1088 + $0x68] sm:$0xff] %v1263
          %1280 = vst [vmem:[%s1088 + $0x70] sm:$0xff] %v1264
          %1281 = vst [vmem:[%s1088 + $0x78] sm:$0xff] %v1265
          %v1282 = vmul.f32 %v1072, %v443
          %v1283 = vmul.f32 %v1073, %v444
          %v1284 = vmul.f32 %v1074, %v445
          %v1285 = vmul.f32 %v1075, %v446
          %v1286 = vmul.f32 %v1076, %v447
          %v1287 = vmul.f32 %v1077, %v448
          %v1288 = vmul.f32 %v1078, %v449
          %v1289 = vmul.f32 %v1079, %v450
          %v1290 = vmul.f32 %v1080, %v451
          %v1291 = vmul.f32 %v1081, %v452
          %v1292 = vmul.f32 %v1082, %v453
          %v1293 = vmul.f32 %v1083, %v454
          %v1294 = vmul.f32 %v1084, %v455
          %v1295 = vmul.f32 %v1085, %v456
          %v1296 = vmul.f32 %v1086, %v457
          %v1297 = vmul.f32 %v1087, %v458
          %s1298 = scalar_lea.vmem [#allocation2], 512
          %v1299 = vld [vmem:[%s1298] sm:$0xff]
          %v1300 = vld [vmem:[%s1298 + $0x8] sm:$0xff]
          %v1301 = vld [vmem:[%s1298 + $0x10] sm:$0xff]
          %v1302 = vld [vmem:[%s1298 + $0x18] sm:$0xff]
          %v1303 = vld [vmem:[%s1298 + $0x20] sm:$0xff]
          %v1304 = vld [vmem:[%s1298 + $0x28] sm:$0xff]
          %v1305 = vld [vmem:[%s1298 + $0x30] sm:$0xff]
          %v1306 = vld [vmem:[%s1298 + $0x38] sm:$0xff]
          %v1307 = vld [vmem:[%s1298 + $0x40] sm:$0xff]
          %v1308 = vld [vmem:[%s1298 + $0x48] sm:$0xff]
          %v1309 = vld [vmem:[%s1298 + $0x50] sm:$0xff]
          %v1310 = vld [vmem:[%s1298 + $0x58] sm:$0xff]
          %v1311 = vld [vmem:[%s1298 + $0x60] sm:$0xff]
          %v1312 = vld [vmem:[%s1298 + $0x68] sm:$0xff]
          %v1313 = vld [vmem:[%s1298 + $0x70] sm:$0xff]
          %v1314 = vld [vmem:[%s1298 + $0x78] sm:$0xff]
          %1315 = vmatprep.subr.mxu0 0.0
          %1316 = vmatpush1.msra.mxu0 %v1297
          %1317 = vmatprep.subr.mxu0 0.0
          %1318 = vmatpush1.msra.mxu0 %v1296
          %1319 = vmatprep.subr.mxu0 0.0
          %1320 = vmatpush1.msra.mxu0 %v1295
          %1321 = vmatprep.subr.mxu0 0.0
          %1322 = vmatpush1.msra.mxu0 %v1294
          %1323 = vmatprep.subr.mxu0 0.0
          %1324 = vmatpush1.msra.mxu0 %v1293
          %1325 = vmatprep.subr.mxu0 0.0
          %1326 = vmatpush1.msra.mxu0 %v1292
          %1327 = vmatprep.subr.mxu0 0.0
          %1328 = vmatpush1.msra.mxu0 %v1291
          %1329 = vmatprep.subr.mxu0 0.0
          %1330 = vmatpush1.msra.mxu0 %v1290
          %1331 = vmatprep.subr.mxu0 0.0
          %1332 = vmatpush1.msra.mxu0 %v1289
          %1333 = vmatprep.subr.mxu0 0.0
          %1334 = vmatpush1.msra.mxu0 %v1288
          %1335 = vmatprep.subr.mxu0 0.0
          %1336 = vmatpush1.msra.mxu0 %v1287
          %1337 = vmatprep.subr.mxu0 0.0
          %1338 = vmatpush1.msra.mxu0 %v1286
          %1339 = vmatprep.subr.mxu0 0.0
          %1340 = vmatpush1.msra.mxu0 %v1285
          %1341 = vmatprep.subr.mxu0 0.0
          %1342 = vmatpush1.msra.mxu0 %v1284
          %1343 = vmatprep.subr.mxu0 0.0
          %1344 = vmatpush1.msra.mxu0 %v1283
          %1345 = vmatprep.subr.mxu0 0.0
          %1346 = vmatpush1.msra.mxu0 %v1282
          %1347 = vmatprep.subr.mxu0 0.0
          %1348 = vmatpush2.msra.mxu0 0.0
          %1349 = vmatprep.subr.mxu0 0.0
          %1350 = vmatpush2.msra.mxu0 0.0
          %1351 = vmatprep.subr.mxu0 0.0
          %1352 = vmatpush2.msra.mxu0 0.0
          %1353 = vmatprep.subr.mxu0 0.0
          %1354 = vmatpush2.msra.mxu0 0.0
          %1355 = vmatprep.subr.mxu0 0.0
          %1356 = vmatpush2.msra.mxu0 0.0
          %1357 = vmatprep.subr.mxu0 0.0
          %1358 = vmatpush2.msra.mxu0 0.0
          %1359 = vmatprep.subr.mxu0 0.0
          %1360 = vmatpush2.msra.mxu0 0.0
          %1361 = vmatprep.subr.mxu0 0.0
          %1362 = vmatpush2.msra.mxu0 0.0
          %1363 = vmatprep.subr.mxu0 0.0
          %1364 = vmatpush2.msra.mxu0 0.0
          %1365 = vmatprep.subr.mxu0 0.0
          %1366 = vmatpush2.msra.mxu0 0.0
          %1367 = vmatprep.subr.mxu0 0.0
          %1368 = vmatpush2.msra.mxu0 0.0
          %1369 = vmatprep.subr.mxu0 0.0
          %1370 = vmatpush2.msra.mxu0 0.0
          %1371 = vmatprep.subr.mxu0 0.0
          %1372 = vmatpush2.msra.mxu0 0.0
          %1373 = vmatprep.subr.mxu0 0.0
          %1374 = vmatpush2.msra.mxu0 0.0
          %1375 = vmatprep.subr.mxu0 0.0
          %1376 = vmatpush2.msra.mxu0 0.0
          %1377 = vmatprep.subr.mxu0 0.0
          %1378 = vmatpush2.msra.mxu0 0.0
          %1379 = vmatprep.mubr.f32.mxu0 0.0
          %1380 = vmatmul.mubr.f32.gmra.mxu0 %v427
          %v1381 = vpop.f32.mrf.mxu0
          %v1382 = vadd.f32 0.0, %v1381
          %v1383 = vpop.f32.mrf.mxu0
          %1384 = vmatprep.mubr.f32.mxu0 0.0
          %1385 = vmatmul.mubr.f32.gmra.mxu0 %v428
          %v1386 = vpop.f32.mrf.mxu0
          %v1387 = vadd.f32 0.0, %v1386
          %v1388 = vpop.f32.mrf.mxu0
          %1389 = vmatprep.mubr.f32.mxu0 0.0
          %1390 = vmatmul.mubr.f32.gmra.mxu0 %v429
          %v1391 = vpop.f32.mrf.mxu0
          %v1392 = vadd.f32 0.0, %v1391
          %v1393 = vpop.f32.mrf.mxu0
          %1394 = vmatprep.mubr.f32.mxu0 0.0
          %1395 = vmatmul.mubr.f32.gmra.mxu0 %v430
          %v1396 = vpop.f32.mrf.mxu0
          %v1397 = vadd.f32 0.0, %v1396
          %v1398 = vpop.f32.mrf.mxu0
          %1399 = vmatprep.mubr.f32.mxu0 0.0
          %1400 = vmatmul.mubr.f32.gmra.mxu0 %v431
          %v1401 = vpop.f32.mrf.mxu0
          %v1402 = vadd.f32 0.0, %v1401
          %v1403 = vpop.f32.mrf.mxu0
          %1404 = vmatprep.mubr.f32.mxu0 0.0
          %1405 = vmatmul.mubr.f32.gmra.mxu0 %v432
          %v1406 = vpop.f32.mrf.mxu0
          %v1407 = vadd.f32 0.0, %v1406
          %v1408 = vpop.f32.mrf.mxu0
          %1409 = vmatprep.mubr.f32.mxu0 0.0
          %1410 = vmatmul.mubr.f32.gmra.mxu0 %v433
          %v1411 = vpop.f32.mrf.mxu0
          %v1412 = vadd.f32 0.0, %v1411
          %v1413 = vpop.f32.mrf.mxu0
          %1414 = vmatprep.mubr.f32.mxu0 0.0
          %1415 = vmatmul.mubr.f32.gmra.mxu0 %v434
          %v1416 = vpop.f32.mrf.mxu0
          %v1417 = vadd.f32 0.0, %v1416
          %v1418 = vpop.f32.mrf.mxu0
          %1419 = vmatprep.mubr.f32.mxu0 0.0
          %1420 = vmatmul.mubr.f32.gmra.mxu0 %v435
          %v1421 = vpop.f32.mrf.mxu0
          %v1422 = vadd.f32 0.0, %v1421
          %v1423 = vpop.f32.mrf.mxu0
          %1424 = vmatprep.mubr.f32.mxu0 0.0
          %1425 = vmatmul.mubr.f32.gmra.mxu0 %v436
          %v1426 = vpop.f32.mrf.mxu0
          %v1427 = vadd.f32 0.0, %v1426
          %v1428 = vpop.f32.mrf.mxu0
          %1429 = vmatprep.mubr.f32.mxu0 0.0
          %1430 = vmatmul.mubr.f32.gmra.mxu0 %v437
          %v1431 = vpop.f32.mrf.mxu0
          %v1432 = vadd.f32 0.0, %v1431
          %v1433 = vpop.f32.mrf.mxu0
          %1434 = vmatprep.mubr.f32.mxu0 0.0
          %1435 = vmatmul.mubr.f32.gmra.mxu0 %v438
          %v1436 = vpop.f32.mrf.mxu0
          %v1437 = vadd.f32 0.0, %v1436
          %v1438 = vpop.f32.mrf.mxu0
          %1439 = vmatprep.mubr.f32.mxu0 0.0
          %1440 = vmatmul.mubr.f32.gmra.mxu0 %v439
          %v1441 = vpop.f32.mrf.mxu0
          %v1442 = vadd.f32 0.0, %v1441
          %v1443 = vpop.f32.mrf.mxu0
          %1444 = vmatprep.mubr.f32.mxu0 0.0
          %1445 = vmatmul.mubr.f32.gmra.mxu0 %v440
          %v1446 = vpop.f32.mrf.mxu0
          %v1447 = vadd.f32 0.0, %v1446
          %v1448 = vpop.f32.mrf.mxu0
          %1449 = vmatprep.mubr.f32.mxu0 0.0
          %1450 = vmatmul.mubr.f32.gmra.mxu0 %v441
          %v1451 = vpop.f32.mrf.mxu0
          %v1452 = vadd.f32 0.0, %v1451
          %v1453 = vpop.f32.mrf.mxu0
          %1454 = vmatprep.mubr.f32.mxu0 0.0
          %1455 = vmatmul.mubr.f32.gmra.mxu0 %v442
          %v1456 = vpop.f32.mrf.mxu0
          %v1457 = vadd.f32 0.0, %v1456
          %v1458 = vpop.f32.mrf.mxu0
          %1459 = vdwg.mxu0
          %v1460 = vadd.f32 %v1299, %v1382
          %v1461 = vadd.f32 %v1300, %v1387
          %v1462 = vadd.f32 %v1301, %v1392
          %v1463 = vadd.f32 %v1302, %v1397
          %v1464 = vadd.f32 %v1303, %v1402
          %v1465 = vadd.f32 %v1304, %v1407
          %v1466 = vadd.f32 %v1305, %v1412
          %v1467 = vadd.f32 %v1306, %v1417
          %v1468 = vadd.f32 %v1307, %v1422
          %v1469 = vadd.f32 %v1308, %v1427
          %v1470 = vadd.f32 %v1309, %v1432
          %v1471 = vadd.f32 %v1310, %v1437
          %v1472 = vadd.f32 %v1311, %v1442
          %v1473 = vadd.f32 %v1312, %v1447
          %v1474 = vadd.f32 %v1313, %v1452
          %v1475 = vadd.f32 %v1314, %v1457
          %1476 = vst [vmem:[%s1298] sm:$0xff] %v1460
          %1477 = vst [vmem:[%s1298 + $0x8] sm:$0xff] %v1461
          %1478 = vst [vmem:[%s1298 + $0x10] sm:$0xff] %v1462
          %1479 = vst [vmem:[%s1298 + $0x18] sm:$0xff] %v1463
          %1480 = vst [vmem:[%s1298 + $0x20] sm:$0xff] %v1464
          %1481 = vst [vmem:[%s1298 + $0x28] sm:$0xff] %v1465
          %1482 = vst [vmem:[%s1298 + $0x30] sm:$0xff] %v1466
          %1483 = vst [vmem:[%s1298 + $0x38] sm:$0xff] %v1467
          %1484 = vst [vmem:[%s1298 + $0x40] sm:$0xff] %v1468
          %1485 = vst [vmem:[%s1298 + $0x48] sm:$0xff] %v1469
          %1486 = vst [vmem:[%s1298 + $0x50] sm:$0xff] %v1470
          %1487 = vst [vmem:[%s1298 + $0x58] sm:$0xff] %v1471
          %1488 = vst [vmem:[%s1298 + $0x60] sm:$0xff] %v1472
          %1489 = vst [vmem:[%s1298 + $0x68] sm:$0xff] %v1473
          %1490 = vst [vmem:[%s1298 + $0x70] sm:$0xff] %v1474
          %1491 = vst [vmem:[%s1298 + $0x78] sm:$0xff] %v1475
          %v1492 = vmul.f32 %v1282, %v443
          %v1493 = vmul.f32 %v1283, %v444
          %v1494 = vmul.f32 %v1284, %v445
          %v1495 = vmul.f32 %v1285, %v446
          %v1496 = vmul.f32 %v1286, %v447
          %v1497 = vmul.f32 %v1287, %v448
          %v1498 = vmul.f32 %v1288, %v449
          %v1499 = vmul.f32 %v1289, %v450
          %v1500 = vmul.f32 %v1290, %v451
          %v1501 = vmul.f32 %v1291, %v452
          %v1502 = vmul.f32 %v1292, %v453
          %v1503 = vmul.f32 %v1293, %v454
          %v1504 = vmul.f32 %v1294, %v455
          %v1505 = vmul.f32 %v1295, %v456
          %v1506 = vmul.f32 %v1296, %v457
          %v1507 = vmul.f32 %v1297, %v458
          %s1508 = scalar_lea.vmem [#allocation2], 640
          %v1509 = vld [vmem:[%s1508] sm:$0xff]
          %v1510 = vld [vmem:[%s1508 + $0x8] sm:$0xff]
          %v1511 = vld [vmem:[%s1508 + $0x10] sm:$0xff]
          %v1512 = vld [vmem:[%s1508 + $0x18] sm:$0xff]
          %v1513 = vld [vmem:[%s1508 + $0x20] sm:$0xff]
          %v1514 = vld [vmem:[%s1508 + $0x28] sm:$0xff]
          %v1515 = vld [vmem:[%s1508 + $0x30] sm:$0xff]
          %v1516 = vld [vmem:[%s1508 + $0x38] sm:$0xff]
          %v1517 = vld [vmem:[%s1508 + $0x40] sm:$0xff]
          %v1518 = vld [vmem:[%s1508 + $0x48] sm:$0xff]
          %v1519 = vld [vmem:[%s1508 + $0x50] sm:$0xff]
          %v1520 = vld [vmem:[%s1508 + $0x58] sm:$0xff]
          %v1521 = vld [vmem:[%s1508 + $0x60] sm:$0xff]
          %v1522 = vld [vmem:[%s1508 + $0x68] sm:$0xff]
          %v1523 = vld [vmem:[%s1508 + $0x70] sm:$0xff]
          %v1524 = vld [vmem:[%s1508 + $0x78] sm:$0xff]
          %1525 = vmatprep.subr.mxu0 0.0
          %1526 = vmatpush1.msra.mxu0 %v1507
          %1527 = vmatprep.subr.mxu0 0.0
          %1528 = vmatpush1.msra.mxu0 %v1506
          %1529 = vmatprep.subr.mxu0 0.0
          %1530 = vmatpush1.msra.mxu0 %v1505
          %1531 = vmatprep.subr.mxu0 0.0
          %1532 = vmatpush1.msra.mxu0 %v1504
          %1533 = vmatprep.subr.mxu0 0.0
          %1534 = vmatpush1.msra.mxu0 %v1503
          %1535 = vmatprep.subr.mxu0 0.0
          %1536 = vmatpush1.msra.mxu0 %v1502
          %1537 = vmatprep.subr.mxu0 0.0
          %1538 = vmatpush1.msra.mxu0 %v1501
          %1539 = vmatprep.subr.mxu0 0.0
          %1540 = vmatpush1.msra.mxu0 %v1500
          %1541 = vmatprep.subr.mxu0 0.0
          %1542 = vmatpush1.msra.mxu0 %v1499
          %1543 = vmatprep.subr.mxu0 0.0
          %1544 = vmatpush1.msra.mxu0 %v1498
          %1545 = vmatprep.subr.mxu0 0.0
          %1546 = vmatpush1.msra.mxu0 %v1497
          %1547 = vmatprep.subr.mxu0 0.0
          %1548 = vmatpush1.msra.mxu0 %v1496
          %1549 = vmatprep.subr.mxu0 0.0
          %1550 = vmatpush1.msra.mxu0 %v1495
          %1551 = vmatprep.subr.mxu0 0.0
          %1552 = vmatpush1.msra.mxu0 %v1494
          %1553 = vmatprep.subr.mxu0 0.0
          %1554 = vmatpush1.msra.mxu0 %v1493
          %1555 = vmatprep.subr.mxu0 0.0
          %1556 = vmatpush1.msra.mxu0 %v1492
          %1557 = vmatprep.subr.mxu0 0.0
          %1558 = vmatpush2.msra.mxu0 0.0
          %1559 = vmatprep.subr.mxu0 0.0
          %1560 = vmatpush2.msra.mxu0 0.0
          %1561 = vmatprep.subr.mxu0 0.0
          %1562 = vmatpush2.msra.mxu0 0.0
          %1563 = vmatprep.subr.mxu0 0.0
          %1564 = vmatpush2.msra.mxu0 0.0
          %1565 = vmatprep.subr.mxu0 0.0
          %1566 = vmatpush2.msra.mxu0 0.0
          %1567 = vmatprep.subr.mxu0 0.0
          %1568 = vmatpush2.msra.mxu0 0.0
          %1569 = vmatprep.subr.mxu0 0.0
          %1570 = vmatpush2.msra.mxu0 0.0
          %1571 = vmatprep.subr.mxu0 0.0
          %1572 = vmatpush2.msra.mxu0 0.0
          %1573 = vmatprep.subr.mxu0 0.0
          %1574 = vmatpush2.msra.mxu0 0.0
          %1575 = vmatprep.subr.mxu0 0.0
          %1576 = vmatpush2.msra.mxu0 0.0
          %1577 = vmatprep.subr.mxu0 0.0
          %1578 = vmatpush2.msra.mxu0 0.0
          %1579 = vmatprep.subr.mxu0 0.0
          %1580 = vmatpush2.msra.mxu0 0.0
          %1581 = vmatprep.subr.mxu0 0.0
          %1582 = vmatpush2.msra.mxu0 0.0
          %1583 = vmatprep.subr.mxu0 0.0
          %1584 = vmatpush2.msra.mxu0 0.0
          %1585 = vmatprep.subr.mxu0 0.0
          %1586 = vmatpush2.msra.mxu0 0.0
          %1587 = vmatprep.subr.mxu0 0.0
          %1588 = vmatpush2.msra.mxu0 0.0
          %1589 = vmatprep.mubr.f32.mxu0 0.0
          %1590 = vmatmul.mubr.f32.gmra.mxu0 %v427
          %v1591 = vpop.f32.mrf.mxu0
          %v1592 = vadd.f32 0.0, %v1591
          %v1593 = vpop.f32.mrf.mxu0
          %1594 = vmatprep.mubr.f32.mxu0 0.0
          %1595 = vmatmul.mubr.f32.gmra.mxu0 %v428
          %v1596 = vpop.f32.mrf.mxu0
          %v1597 = vadd.f32 0.0, %v1596
          %v1598 = vpop.f32.mrf.mxu0
          %1599 = vmatprep.mubr.f32.mxu0 0.0
          %1600 = vmatmul.mubr.f32.gmra.mxu0 %v429
          %v1601 = vpop.f32.mrf.mxu0
          %v1602 = vadd.f32 0.0, %v1601
          %v1603 = vpop.f32.mrf.mxu0
          %1604 = vmatprep.mubr.f32.mxu0 0.0
          %1605 = vmatmul.mubr.f32.gmra.mxu0 %v430
          %v1606 = vpop.f32.mrf.mxu0
          %v1607 = vadd.f32 0.0, %v1606
          %v1608 = vpop.f32.mrf.mxu0
          %1609 = vmatprep.mubr.f32.mxu0 0.0
          %1610 = vmatmul.mubr.f32.gmra.mxu0 %v431
          %v1611 = vpop.f32.mrf.mxu0
          %v1612 = vadd.f32 0.0, %v1611
          %v1613 = vpop.f32.mrf.mxu0
          %1614 = vmatprep.mubr.f32.mxu0 0.0
          %1615 = vmatmul.mubr.f32.gmra.mxu0 %v432
          %v1616 = vpop.f32.mrf.mxu0
          %v1617 = vadd.f32 0.0, %v1616
          %v1618 = vpop.f32.mrf.mxu0
          %1619 = vmatprep.mubr.f32.mxu0 0.0
          %1620 = vmatmul.mubr.f32.gmra.mxu0 %v433
          %v1621 = vpop.f32.mrf.mxu0
          %v1622 = vadd.f32 0.0, %v1621
          %v1623 = vpop.f32.mrf.mxu0
          %1624 = vmatprep.mubr.f32.mxu0 0.0
          %1625 = vmatmul.mubr.f32.gmra.mxu0 %v434
          %v1626 = vpop.f32.mrf.mxu0
          %v1627 = vadd.f32 0.0, %v1626
          %v1628 = vpop.f32.mrf.mxu0
          %1629 = vmatprep.mubr.f32.mxu0 0.0
          %1630 = vmatmul.mubr.f32.gmra.mxu0 %v435
          %v1631 = vpop.f32.mrf.mxu0
          %v1632 = vadd.f32 0.0, %v1631
          %v1633 = vpop.f32.mrf.mxu0
          %1634 = vmatprep.mubr.f32.mxu0 0.0
          %1635 = vmatmul.mubr.f32.gmra.mxu0 %v436
          %v1636 = vpop.f32.mrf.mxu0
          %v1637 = vadd.f32 0.0, %v1636
          %v1638 = vpop.f32.mrf.mxu0
          %1639 = vmatprep.mubr.f32.mxu0 0.0
          %1640 = vmatmul.mubr.f32.gmra.mxu0 %v437
          %v1641 = vpop.f32.mrf.mxu0
          %v1642 = vadd.f32 0.0, %v1641
          %v1643 = vpop.f32.mrf.mxu0
          %1644 = vmatprep.mubr.f32.mxu0 0.0
          %1645 = vmatmul.mubr.f32.gmra.mxu0 %v438
          %v1646 = vpop.f32.mrf.mxu0
          %v1647 = vadd.f32 0.0, %v1646
          %v1648 = vpop.f32.mrf.mxu0
          %1649 = vmatprep.mubr.f32.mxu0 0.0
          %1650 = vmatmul.mubr.f32.gmra.mxu0 %v439
          %v1651 = vpop.f32.mrf.mxu0
          %v1652 = vadd.f32 0.0, %v1651
          %v1653 = vpop.f32.mrf.mxu0
          %1654 = vmatprep.mubr.f32.mxu0 0.0
          %1655 = vmatmul.mubr.f32.gmra.mxu0 %v440
          %v1656 = vpop.f32.mrf.mxu0
          %v1657 = vadd.f32 0.0, %v1656
          %v1658 = vpop.f32.mrf.mxu0
          %1659 = vmatprep.mubr.f32.mxu0 0.0
          %1660 = vmatmul.mubr.f32.gmra.mxu0 %v441
          %v1661 = vpop.f32.mrf.mxu0
          %v1662 = vadd.f32 0.0, %v1661
          %v1663 = vpop.f32.mrf.mxu0
          %1664 = vmatprep.mubr.f32.mxu0 0.0
          %1665 = vmatmul.mubr.f32.gmra.mxu0 %v442
          %v1666 = vpop.f32.mrf.mxu0
          %v1667 = vadd.f32 0.0, %v1666
          %v1668 = vpop.f32.mrf.mxu0
          %1669 = vdwg.mxu0
          %v1670 = vadd.f32 %v1509, %v1592
          %v1671 = vadd.f32 %v1510, %v1597
          %v1672 = vadd.f32 %v1511, %v1602
          %v1673 = vadd.f32 %v1512, %v1607
          %v1674 = vadd.f32 %v1513, %v1612
          %v1675 = vadd.f32 %v1514, %v1617
          %v1676 = vadd.f32 %v1515, %v1622
          %v1677 = vadd.f32 %v1516, %v1627
          %v1678 = vadd.f32 %v1517, %v1632
          %v1679 = vadd.f32 %v1518, %v1637
          %v1680 = vadd.f32 %v1519, %v1642
          %v1681 = vadd.f32 %v1520, %v1647
          %v1682 = vadd.f32 %v1521, %v1652
          %v1683 = vadd.f32 %v1522, %v1657
          %v1684 = vadd.f32 %v1523, %v1662
          %v1685 = vadd.f32 %v1524, %v1667
          %1686 = vst [vmem:[%s1508] sm:$0xff] %v1670
          %1687 = vst [vmem:[%s1508 + $0x8] sm:$0xff] %v1671
          %1688 = vst [vmem:[%s1508 + $0x10] sm:$0xff] %v1672
          %1689 = vst [vmem:[%s1508 + $0x18] sm:$0xff] %v1673
          %1690 = vst [vmem:[%s1508 + $0x20] sm:$0xff] %v1674
          %1691 = vst [vmem:[%s1508 + $0x28] sm:$0xff] %v1675
          %1692 = vst [vmem:[%s1508 + $0x30] sm:$0xff] %v1676
          %1693 = vst [vmem:[%s1508 + $0x38] sm:$0xff] %v1677
          %1694 = vst [vmem:[%s1508 + $0x40] sm:$0xff] %v1678
          %1695 = vst [vmem:[%s1508 + $0x48] sm:$0xff] %v1679
          %1696 = vst [vmem:[%s1508 + $0x50] sm:$0xff] %v1680
          %1697 = vst [vmem:[%s1508 + $0x58] sm:$0xff] %v1681
          %1698 = vst [vmem:[%s1508 + $0x60] sm:$0xff] %v1682
          %1699 = vst [vmem:[%s1508 + $0x68] sm:$0xff] %v1683
          %1700 = vst [vmem:[%s1508 + $0x70] sm:$0xff] %v1684
          %1701 = vst [vmem:[%s1508 + $0x78] sm:$0xff] %v1685
        $region52: #{tpu_custom_call.1} parent=31 // pred_fallthru
          _
        %p1702 = scmp.eq.s32.totalorder %s38, 1
        // Predicated region
        $region53: #{tpu_custom_call.1} parent=31 // pred_check
          %p1703 = pneg %p1702
        $region54: #{tpu_custom_call.1} parent=31 // pred_check_branch
          %1705 = sbr.rel (%p1703) target = $region56
        $region55: #{tpu_custom_call.1} parent=31 // pred_region
          %v1706 = vld [vmem:[%s259] sm:$0xff]
          %v1707 = vld [vmem:[%s259 + $0x8] sm:$0xff]
          %v1708 = vld [vmem:[%s259 + $0x10] sm:$0xff]
          %v1709 = vld [vmem:[%s259 + $0x18] sm:$0xff]
          %v1710 = vld [vmem:[%s259 + $0x20] sm:$0xff]
          %v1711 = vld [vmem:[%s259 + $0x28] sm:$0xff]
          %v1712 = vld [vmem:[%s259 + $0x30] sm:$0xff]
          %v1713 = vld [vmem:[%s259 + $0x38] sm:$0xff]
          %v1714 = vld [vmem:[%s259 + $0x40] sm:$0xff]
          %v1715 = vld [vmem:[%s259 + $0x48] sm:$0xff]
          %v1716 = vld [vmem:[%s259 + $0x50] sm:$0xff]
          %v1717 = vld [vmem:[%s259 + $0x58] sm:$0xff]
          %v1718 = vld [vmem:[%s259 + $0x60] sm:$0xff]
          %v1719 = vld [vmem:[%s259 + $0x68] sm:$0xff]
          %v1720 = vld [vmem:[%s259 + $0x70] sm:$0xff]
          %v1721 = vld [vmem:[%s259 + $0x78] sm:$0xff]
          %v1722 = vrcp.pop 5.0
          %v1723 = vmul.f32 %v1706, %v1722
          %v1724 = vmul.f32 %v1707, %v1722
          %v1725 = vmul.f32 %v1708, %v1722
          %v1726 = vmul.f32 %v1709, %v1722
          %v1727 = vmul.f32 %v1710, %v1722
          %v1728 = vmul.f32 %v1711, %v1722
          %v1729 = vmul.f32 %v1712, %v1722
          %v1730 = vmul.f32 %v1713, %v1722
          %v1731 = vmul.f32 %v1714, %v1722
          %v1732 = vmul.f32 %v1715, %v1722
          %v1733 = vmul.f32 %v1716, %v1722
          %v1734 = vmul.f32 %v1717, %v1722
          %v1735 = vmul.f32 %v1718, %v1722
          %v1736 = vmul.f32 %v1719, %v1722
          %v1737 = vmul.f32 %v1720, %v1722
          %v1738 = vmul.f32 %v1721, %v1722
          %v1739 = vsub.f32 1.0, %v1723
          %v1740 = vsub.f32 1.0, %v1724
          %v1741 = vsub.f32 1.0, %v1725
          %v1742 = vsub.f32 1.0, %v1726
          %v1743 = vsub.f32 1.0, %v1727
          %v1744 = vsub.f32 1.0, %v1728
          %v1745 = vsub.f32 1.0, %v1729
          %v1746 = vsub.f32 1.0, %v1730
          %v1747 = vsub.f32 1.0, %v1731
          %v1748 = vsub.f32 1.0, %v1732
          %v1749 = vsub.f32 1.0, %v1733
          %v1750 = vsub.f32 1.0, %v1734
          %v1751 = vsub.f32 1.0, %v1735
          %v1752 = vsub.f32 1.0, %v1736
          %v1753 = vsub.f32 1.0, %v1737
          %v1754 = vsub.f32 1.0, %v1738
          %v1755 = vmul.f32 %v1706, %v1739
          %v1756 = vmul.f32 %v1707, %v1740
          %v1757 = vmul.f32 %v1708, %v1741
          %v1758 = vmul.f32 %v1709, %v1742
          %v1759 = vmul.f32 %v1710, %v1743
          %v1760 = vmul.f32 %v1711, %v1744
          %v1761 = vmul.f32 %v1712, %v1745
          %v1762 = vmul.f32 %v1713, %v1746
          %v1763 = vmul.f32 %v1714, %v1747
          %v1764 = vmul.f32 %v1715, %v1748
          %v1765 = vmul.f32 %v1716, %v1749
          %v1766 = vmul.f32 %v1717, %v1750
          %v1767 = vmul.f32 %v1718, %v1751
          %v1768 = vmul.f32 %v1719, %v1752
          %v1769 = vmul.f32 %v1720, %v1753
          %v1770 = vmul.f32 %v1721, %v1754
          %v1771 = vsub.f32 %v1706, 1.0
          %v1772 = vsub.f32 %v1707, 1.0
          %v1773 = vsub.f32 %v1708, 1.0
          %v1774 = vsub.f32 %v1709, 1.0
          %v1775 = vsub.f32 %v1710, 1.0
          %v1776 = vsub.f32 %v1711, 1.0
          %v1777 = vsub.f32 %v1712, 1.0
          %v1778 = vsub.f32 %v1713, 1.0
          %v1779 = vsub.f32 %v1714, 1.0
          %v1780 = vsub.f32 %v1715, 1.0
          %v1781 = vsub.f32 %v1716, 1.0
          %v1782 = vsub.f32 %v1717, 1.0
          %v1783 = vsub.f32 %v1718, 1.0
          %v1784 = vsub.f32 %v1719, 1.0
          %v1785 = vsub.f32 %v1720, 1.0
          %v1786 = vsub.f32 %v1721, 1.0
          %v1787 = vmul.f32 %v1755, %v1771
          %v1788 = vmul.f32 %v1756, %v1772
          %v1789 = vmul.f32 %v1757, %v1773
          %v1790 = vmul.f32 %v1758, %v1774
          %v1791 = vmul.f32 %v1759, %v1775
          %v1792 = vmul.f32 %v1760, %v1776
          %v1793 = vmul.f32 %v1761, %v1777
          %v1794 = vmul.f32 %v1762, %v1778
          %v1795 = vmul.f32 %v1763, %v1779
          %v1796 = vmul.f32 %v1764, %v1780
          %v1797 = vmul.f32 %v1765, %v1781
          %v1798 = vmul.f32 %v1766, %v1782
          %v1799 = vmul.f32 %v1767, %v1783
          %v1800 = vmul.f32 %v1768, %v1784
          %v1801 = vmul.f32 %v1769, %v1785
          %v1802 = vmul.f32 %v1770, %v1786
          %v1803 = vadd.f32 %v1787, 0.1
          %v1804 = vadd.f32 %v1788, 0.1
          %v1805 = vadd.f32 %v1789, 0.1
          %v1806 = vadd.f32 %v1790, 0.1
          %v1807 = vadd.f32 %v1791, 0.1
          %v1808 = vadd.f32 %v1792, 0.1
          %v1809 = vadd.f32 %v1793, 0.1
          %v1810 = vadd.f32 %v1794, 0.1
          %v1811 = vadd.f32 %v1795, 0.1
          %v1812 = vadd.f32 %v1796, 0.1
          %v1813 = vadd.f32 %v1797, 0.1
          %v1814 = vadd.f32 %v1798, 0.1
          %v1815 = vadd.f32 %v1799, 0.1
          %v1816 = vadd.f32 %v1800, 0.1
          %v1817 = vadd.f32 %v1801, 0.1
          %v1818 = vadd.f32 %v1802, 0.1
          %v1819 = vmul.f32 %v1706, 0.9
          %v1820 = vmul.f32 %v1707, 0.9
          %v1821 = vmul.f32 %v1708, 0.9
          %v1822 = vmul.f32 %v1709, 0.9
          %v1823 = vmul.f32 %v1710, 0.9
          %v1824 = vmul.f32 %v1711, 0.9
          %v1825 = vmul.f32 %v1712, 0.9
          %v1826 = vmul.f32 %v1713, 0.9
          %v1827 = vmul.f32 %v1714, 0.9
          %v1828 = vmul.f32 %v1715, 0.9
          %v1829 = vmul.f32 %v1716, 0.9
          %v1830 = vmul.f32 %v1717, 0.9
          %v1831 = vmul.f32 %v1718, 0.9
          %v1832 = vmul.f32 %v1719, 0.9
          %v1833 = vmul.f32 %v1720, 0.9
          %v1834 = vmul.f32 %v1721, 0.9
          %v1835 = vadd.f32 %v1819, 5.0
          %v1836 = vadd.f32 %v1820, 5.0
          %v1837 = vadd.f32 %v1821, 5.0
          %v1838 = vadd.f32 %v1822, 5.0
          %v1839 = vadd.f32 %v1823, 5.0
          %v1840 = vadd.f32 %v1824, 5.0
          %v1841 = vadd.f32 %v1825, 5.0
          %v1842 = vadd.f32 %v1826, 5.0
          %v1843 = vadd.f32 %v1827, 5.0
          %v1844 = vadd.f32 %v1828, 5.0
          %v1845 = vadd.f32 %v1829, 5.0
          %v1846 = vadd.f32 %v1830, 5.0
          %v1847 = vadd.f32 %v1831, 5.0
          %v1848 = vadd.f32 %v1832, 5.0
          %v1849 = vadd.f32 %v1833, 5.0
          %v1850 = vadd.f32 %v1834, 5.0
          %v1851 = vrcp.pop %v1835
          %v1852 = vmul.f32 1.0, %v1851
          %v1853 = vrcp.pop %v1836
          %v1854 = vmul.f32 1.0, %v1853
          %v1855 = vrcp.pop %v1837
          %v1856 = vmul.f32 1.0, %v1855
          %v1857 = vrcp.pop %v1838
          %v1858 = vmul.f32 1.0, %v1857
          %v1859 = vrcp.pop %v1839
          %v1860 = vmul.f32 1.0, %v1859
          %v1861 = vrcp.pop %v1840
          %v1862 = vmul.f32 1.0, %v1861
          %v1863 = vrcp.pop %v1841
          %v1864 = vmul.f32 1.0, %v1863
          %v1865 = vrcp.pop %v1842
          %v1866 = vmul.f32 1.0, %v1865
          %v1867 = vrcp.pop %v1843
          %v1868 = vmul.f32 1.0, %v1867
          %v1869 = vrcp.pop %v1844
          %v1870 = vmul.f32 1.0, %v1869
          %v1871 = vrcp.pop %v1845
          %v1872 = vmul.f32 1.0, %v1871
          %v1873 = vrcp.pop %v1846
          %v1874 = vmul.f32 1.0, %v1873
          %v1875 = vrcp.pop %v1847
          %v1876 = vmul.f32 1.0, %v1875
          %v1877 = vrcp.pop %v1848
          %v1878 = vmul.f32 1.0, %v1877
          %v1879 = vrcp.pop %v1849
          %v1880 = vmul.f32 1.0, %v1879
          %v1881 = vrcp.pop %v1850
          %v1882 = vmul.f32 1.0, %v1881
          %v1883 = vmul.f32 %v1852, -0.1
          %v1884 = vmul.f32 %v1854, -0.1
          %v1885 = vmul.f32 %v1856, -0.1
          %v1886 = vmul.f32 %v1858, -0.1
          %v1887 = vmul.f32 %v1860, -0.1
          %v1888 = vmul.f32 %v1862, -0.1
          %v1889 = vmul.f32 %v1864, -0.1
          %v1890 = vmul.f32 %v1866, -0.1
          %v1891 = vmul.f32 %v1868, -0.1
          %v1892 = vmul.f32 %v1870, -0.1
          %v1893 = vmul.f32 %v1872, -0.1
          %v1894 = vmul.f32 %v1874, -0.1
          %v1895 = vmul.f32 %v1876, -0.1
          %v1896 = vmul.f32 %v1878, -0.1
          %v1897 = vmul.f32 %v1880, -0.1
          %v1898 = vmul.f32 %v1882, -0.1
          %s1899 = scalar_lea.vmem [#allocation2], 640
          %v1900 = vld [vmem:[%s1899] sm:$0xff]
          %v1901 = vld [vmem:[%s1899 + $0x8] sm:$0xff]
          %v1902 = vld [vmem:[%s1899 + $0x10] sm:$0xff]
          %v1903 = vld [vmem:[%s1899 + $0x18] sm:$0xff]
          %v1904 = vld [vmem:[%s1899 + $0x20] sm:$0xff]
          %v1905 = vld [vmem:[%s1899 + $0x28] sm:$0xff]
          %v1906 = vld [vmem:[%s1899 + $0x30] sm:$0xff]
          %v1907 = vld [vmem:[%s1899 + $0x38] sm:$0xff]
          %v1908 = vld [vmem:[%s1899 + $0x40] sm:$0xff]
          %v1909 = vld [vmem:[%s1899 + $0x48] sm:$0xff]
          %v1910 = vld [vmem:[%s1899 + $0x50] sm:$0xff]
          %v1911 = vld [vmem:[%s1899 + $0x58] sm:$0xff]
          %v1912 = vld [vmem:[%s1899 + $0x60] sm:$0xff]
          %v1913 = vld [vmem:[%s1899 + $0x68] sm:$0xff]
          %v1914 = vld [vmem:[%s1899 + $0x70] sm:$0xff]
          %v1915 = vld [vmem:[%s1899 + $0x78] sm:$0xff]
          %s1916 = scalar_lea.vmem [#allocation2], 512
          %v1917 = vld [vmem:[%s1916] sm:$0xff]
          %v1918 = vld [vmem:[%s1916 + $0x8] sm:$0xff]
          %v1919 = vld [vmem:[%s1916 + $0x10] sm:$0xff]
          %v1920 = vld [vmem:[%s1916 + $0x18] sm:$0xff]
          %v1921 = vld [vmem:[%s1916 + $0x20] sm:$0xff]
          %v1922 = vld [vmem:[%s1916 + $0x28] sm:$0xff]
          %v1923 = vld [vmem:[%s1916 + $0x30] sm:$0xff]
          %v1924 = vld [vmem:[%s1916 + $0x38] sm:$0xff]
          %v1925 = vld [vmem:[%s1916 + $0x40] sm:$0xff]
          %v1926 = vld [vmem:[%s1916 + $0x48] sm:$0xff]
          %v1927 = vld [vmem:[%s1916 + $0x50] sm:$0xff]
          %v1928 = vld [vmem:[%s1916 + $0x58] sm:$0xff]
          %v1929 = vld [vmem:[%s1916 + $0x60] sm:$0xff]
          %v1930 = vld [vmem:[%s1916 + $0x68] sm:$0xff]
          %v1931 = vld [vmem:[%s1916 + $0x70] sm:$0xff]
          %v1932 = vld [vmem:[%s1916 + $0x78] sm:$0xff]
          %v1933 = vmul.f32 %v1883, %v1900
          %v1934 = vmul.f32 %v1884, %v1901
          %v1935 = vmul.f32 %v1885, %v1902
          %v1936 = vmul.f32 %v1886, %v1903
          %v1937 = vmul.f32 %v1887, %v1904
          %v1938 = vmul.f32 %v1888, %v1905
          %v1939 = vmul.f32 %v1889, %v1906
          %v1940 = vmul.f32 %v1890, %v1907
          %v1941 = vmul.f32 %v1891, %v1908
          %v1942 = vmul.f32 %v1892, %v1909
          %v1943 = vmul.f32 %v1893, %v1910
          %v1944 = vmul.f32 %v1894, %v1911
          %v1945 = vmul.f32 %v1895, %v1912
          %v1946 = vmul.f32 %v1896, %v1913
          %v1947 = vmul.f32 %v1897, %v1914
          %v1948 = vmul.f32 %v1898, %v1915
          %v1949 = vadd.f32 %v1917, %v1933
          %v1950 = vadd.f32 %v1918, %v1934
          %v1951 = vadd.f32 %v1919, %v1935
          %v1952 = vadd.f32 %v1920, %v1936
          %v1953 = vadd.f32 %v1921, %v1937
          %v1954 = vadd.f32 %v1922, %v1938
          %v1955 = vadd.f32 %v1923, %v1939
          %v1956 = vadd.f32 %v1924, %v1940
          %v1957 = vadd.f32 %v1925, %v1941
          %v1958 = vadd.f32 %v1926, %v1942
          %v1959 = vadd.f32 %v1927, %v1943
          %v1960 = vadd.f32 %v1928, %v1944
          %v1961 = vadd.f32 %v1929, %v1945
          %v1962 = vadd.f32 %v1930, %v1946
          %v1963 = vadd.f32 %v1931, %v1947
          %v1964 = vadd.f32 %v1932, %v1948
          %s1965 = scalar_lea.vmem [#allocation2], 384
          %v1966 = vld [vmem:[%s1965] sm:$0xff]
          %v1967 = vld [vmem:[%s1965 + $0x8] sm:$0xff]
          %v1968 = vld [vmem:[%s1965 + $0x10] sm:$0xff]
          %v1969 = vld [vmem:[%s1965 + $0x18] sm:$0xff]
          %v1970 = vld [vmem:[%s1965 + $0x20] sm:$0xff]
          %v1971 = vld [vmem:[%s1965 + $0x28] sm:$0xff]
          %v1972 = vld [vmem:[%s1965 + $0x30] sm:$0xff]
          %v1973 = vld [vmem:[%s1965 + $0x38] sm:$0xff]
          %v1974 = vld [vmem:[%s1965 + $0x40] sm:$0xff]
          %v1975 = vld [vmem:[%s1965 + $0x48] sm:$0xff]
          %v1976 = vld [vmem:[%s1965 + $0x50] sm:$0xff]
          %v1977 = vld [vmem:[%s1965 + $0x58] sm:$0xff]
          %v1978 = vld [vmem:[%s1965 + $0x60] sm:$0xff]
          %v1979 = vld [vmem:[%s1965 + $0x68] sm:$0xff]
          %v1980 = vld [vmem:[%s1965 + $0x70] sm:$0xff]
          %v1981 = vld [vmem:[%s1965 + $0x78] sm:$0xff]
          %v1982 = vmul.f32 %v1883, %v1949
          %v1983 = vmul.f32 %v1884, %v1950
          %v1984 = vmul.f32 %v1885, %v1951
          %v1985 = vmul.f32 %v1886, %v1952
          %v1986 = vmul.f32 %v1887, %v1953
          %v1987 = vmul.f32 %v1888, %v1954
          %v1988 = vmul.f32 %v1889, %v1955
          %v1989 = vmul.f32 %v1890, %v1956
          %v1990 = vmul.f32 %v1891, %v1957
          %v1991 = vmul.f32 %v1892, %v1958
          %v1992 = vmul.f32 %v1893, %v1959
          %v1993 = vmul.f32 %v1894, %v1960
          %v1994 = vmul.f32 %v1895, %v1961
          %v1995 = vmul.f32 %v1896, %v1962
          %v1996 = vmul.f32 %v1897, %v1963
          %v1997 = vmul.f32 %v1898, %v1964
          %v1998 = vadd.f32 %v1966, %v1982
          %v1999 = vadd.f32 %v1967, %v1983
          %v2000 = vadd.f32 %v1968, %v1984
          %v2001 = vadd.f32 %v1969, %v1985
          %v2002 = vadd.f32 %v1970, %v1986
          %v2003 = vadd.f32 %v1971, %v1987
          %v2004 = vadd.f32 %v1972, %v1988
          %v2005 = vadd.f32 %v1973, %v1989
          %v2006 = vadd.f32 %v1974, %v1990
          %v2007 = vadd.f32 %v1975, %v1991
          %v2008 = vadd.f32 %v1976, %v1992
          %v2009 = vadd.f32 %v1977, %v1993
          %v2010 = vadd.f32 %v1978, %v1994
          %v2011 = vadd.f32 %v1979, %v1995
          %v2012 = vadd.f32 %v1980, %v1996
          %v2013 = vadd.f32 %v1981, %v1997
          %s2014 = scalar_lea.vmem [#allocation2], 256
          %v2015 = vld [vmem:[%s2014] sm:$0xff]
          %v2016 = vld [vmem:[%s2014 + $0x8] sm:$0xff]
          %v2017 = vld [vmem:[%s2014 + $0x10] sm:$0xff]
          %v2018 = vld [vmem:[%s2014 + $0x18] sm:$0xff]
          %v2019 = vld [vmem:[%s2014 + $0x20] sm:$0xff]
          %v2020 = vld [vmem:[%s2014 + $0x28] sm:$0xff]
          %v2021 = vld [vmem:[%s2014 + $0x30] sm:$0xff]
          %v2022 = vld [vmem:[%s2014 + $0x38] sm:$0xff]
          %v2023 = vld [vmem:[%s2014 + $0x40] sm:$0xff]
          %v2024 = vld [vmem:[%s2014 + $0x48] sm:$0xff]
          %v2025 = vld [vmem:[%s2014 + $0x50] sm:$0xff]
          %v2026 = vld [vmem:[%s2014 + $0x58] sm:$0xff]
          %v2027 = vld [vmem:[%s2014 + $0x60] sm:$0xff]
          %v2028 = vld [vmem:[%s2014 + $0x68] sm:$0xff]
          %v2029 = vld [vmem:[%s2014 + $0x70] sm:$0xff]
          %v2030 = vld [vmem:[%s2014 + $0x78] sm:$0xff]
          %v2031 = vmul.f32 %v1883, %v1998
          %v2032 = vmul.f32 %v1884, %v1999
          %v2033 = vmul.f32 %v1885, %v2000
          %v2034 = vmul.f32 %v1886, %v2001
          %v2035 = vmul.f32 %v1887, %v2002
          %v2036 = vmul.f32 %v1888, %v2003
          %v2037 = vmul.f32 %v1889, %v2004
          %v2038 = vmul.f32 %v1890, %v2005
          %v2039 = vmul.f32 %v1891, %v2006
          %v2040 = vmul.f32 %v1892, %v2007
          %v2041 = vmul.f32 %v1893, %v2008
          %v2042 = vmul.f32 %v1894, %v2009
          %v2043 = vmul.f32 %v1895, %v2010
          %v2044 = vmul.f32 %v1896, %v2011
          %v2045 = vmul.f32 %v1897, %v2012
          %v2046 = vmul.f32 %v1898, %v2013
          %v2047 = vadd.f32 %v2015, %v2031
          %v2048 = vadd.f32 %v2016, %v2032
          %v2049 = vadd.f32 %v2017, %v2033
          %v2050 = vadd.f32 %v2018, %v2034
          %v2051 = vadd.f32 %v2019, %v2035
          %v2052 = vadd.f32 %v2020, %v2036
          %v2053 = vadd.f32 %v2021, %v2037
          %v2054 = vadd.f32 %v2022, %v2038
          %v2055 = vadd.f32 %v2023, %v2039
          %v2056 = vadd.f32 %v2024, %v2040
          %v2057 = vadd.f32 %v2025, %v2041
          %v2058 = vadd.f32 %v2026, %v2042
          %v2059 = vadd.f32 %v2027, %v2043
          %v2060 = vadd.f32 %v2028, %v2044
          %v2061 = vadd.f32 %v2029, %v2045
          %v2062 = vadd.f32 %v2030, %v2046
          %s2063 = scalar_lea.vmem [#allocation2], 128
          %v2064 = vld [vmem:[%s2063] sm:$0xff]
          %v2065 = vld [vmem:[%s2063 + $0x8] sm:$0xff]
          %v2066 = vld [vmem:[%s2063 + $0x10] sm:$0xff]
          %v2067 = vld [vmem:[%s2063 + $0x18] sm:$0xff]
          %v2068 = vld [vmem:[%s2063 + $0x20] sm:$0xff]
          %v2069 = vld [vmem:[%s2063 + $0x28] sm:$0xff]
          %v2070 = vld [vmem:[%s2063 + $0x30] sm:$0xff]
          %v2071 = vld [vmem:[%s2063 + $0x38] sm:$0xff]
          %v2072 = vld [vmem:[%s2063 + $0x40] sm:$0xff]
          %v2073 = vld [vmem:[%s2063 + $0x48] sm:$0xff]
          %v2074 = vld [vmem:[%s2063 + $0x50] sm:$0xff]
          %v2075 = vld [vmem:[%s2063 + $0x58] sm:$0xff]
          %v2076 = vld [vmem:[%s2063 + $0x60] sm:$0xff]
          %v2077 = vld [vmem:[%s2063 + $0x68] sm:$0xff]
          %v2078 = vld [vmem:[%s2063 + $0x70] sm:$0xff]
          %v2079 = vld [vmem:[%s2063 + $0x78] sm:$0xff]
          %v2080 = vmul.f32 %v1883, %v2047
          %v2081 = vmul.f32 %v1884, %v2048
          %v2082 = vmul.f32 %v1885, %v2049
          %v2083 = vmul.f32 %v1886, %v2050
          %v2084 = vmul.f32 %v1887, %v2051
          %v2085 = vmul.f32 %v1888, %v2052
          %v2086 = vmul.f32 %v1889, %v2053
          %v2087 = vmul.f32 %v1890, %v2054
          %v2088 = vmul.f32 %v1891, %v2055
          %v2089 = vmul.f32 %v1892, %v2056
          %v2090 = vmul.f32 %v1893, %v2057
          %v2091 = vmul.f32 %v1894, %v2058
          %v2092 = vmul.f32 %v1895, %v2059
          %v2093 = vmul.f32 %v1896, %v2060
          %v2094 = vmul.f32 %v1897, %v2061
          %v2095 = vmul.f32 %v1898, %v2062
          %v2096 = vadd.f32 %v2064, %v2080
          %v2097 = vadd.f32 %v2065, %v2081
          %v2098 = vadd.f32 %v2066, %v2082
          %v2099 = vadd.f32 %v2067, %v2083
          %v2100 = vadd.f32 %v2068, %v2084
          %v2101 = vadd.f32 %v2069, %v2085
          %v2102 = vadd.f32 %v2070, %v2086
          %v2103 = vadd.f32 %v2071, %v2087
          %v2104 = vadd.f32 %v2072, %v2088
          %v2105 = vadd.f32 %v2073, %v2089
          %v2106 = vadd.f32 %v2074, %v2090
          %v2107 = vadd.f32 %v2075, %v2091
          %v2108 = vadd.f32 %v2076, %v2092
          %v2109 = vadd.f32 %v2077, %v2093
          %v2110 = vadd.f32 %v2078, %v2094
          %v2111 = vadd.f32 %v2079, %v2095
          %v2112 = vld [vmem:[#allocation2] sm:$0xff]
          %v2113 = vld [vmem:[#allocation2 + $0x8] sm:$0xff]
          %v2114 = vld [vmem:[#allocation2 + $0x10] sm:$0xff]
          %v2115 = vld [vmem:[#allocation2 + $0x18] sm:$0xff]
          %v2116 = vld [vmem:[#allocation2 + $0x20] sm:$0xff]
          %v2117 = vld [vmem:[#allocation2 + $0x28] sm:$0xff]
          %v2118 = vld [vmem:[#allocation2 + $0x30] sm:$0xff]
          %v2119 = vld [vmem:[#allocation2 + $0x38] sm:$0xff]
          %v2120 = vld [vmem:[#allocation2 + $0x40] sm:$0xff]
          %v2121 = vld [vmem:[#allocation2 + $0x48] sm:$0xff]
          %v2122 = vld [vmem:[#allocation2 + $0x50] sm:$0xff]
          %v2123 = vld [vmem:[#allocation2 + $0x58] sm:$0xff]
          %v2124 = vld [vmem:[#allocation2 + $0x60] sm:$0xff]
          %v2125 = vld [vmem:[#allocation2 + $0x68] sm:$0xff]
          %v2126 = vld [vmem:[#allocation2 + $0x70] sm:$0xff]
          %v2127 = vld [vmem:[#allocation2 + $0x78] sm:$0xff]
          %v2128 = vmul.f32 %v1883, %v2096
          %v2129 = vmul.f32 %v1884, %v2097
          %v2130 = vmul.f32 %v1885, %v2098
          %v2131 = vmul.f32 %v1886, %v2099
          %v2132 = vmul.f32 %v1887, %v2100
          %v2133 = vmul.f32 %v1888, %v2101
          %v2134 = vmul.f32 %v1889, %v2102
          %v2135 = vmul.f32 %v1890, %v2103
          %v2136 = vmul.f32 %v1891, %v2104
          %v2137 = vmul.f32 %v1892, %v2105
          %v2138 = vmul.f32 %v1893, %v2106
          %v2139 = vmul.f32 %v1894, %v2107
          %v2140 = vmul.f32 %v1895, %v2108
          %v2141 = vmul.f32 %v1896, %v2109
          %v2142 = vmul.f32 %v1897, %v2110
          %v2143 = vmul.f32 %v1898, %v2111
          %v2144 = vadd.f32 %v2112, %v2128
          %v2145 = vadd.f32 %v2113, %v2129
          %v2146 = vadd.f32 %v2114, %v2130
          %v2147 = vadd.f32 %v2115, %v2131
          %v2148 = vadd.f32 %v2116, %v2132
          %v2149 = vadd.f32 %v2117, %v2133
          %v2150 = vadd.f32 %v2118, %v2134
          %v2151 = vadd.f32 %v2119, %v2135
          %v2152 = vadd.f32 %v2120, %v2136
          %v2153 = vadd.f32 %v2121, %v2137
          %v2154 = vadd.f32 %v2122, %v2138
          %v2155 = vadd.f32 %v2123, %v2139
          %v2156 = vadd.f32 %v2124, %v2140
          %v2157 = vadd.f32 %v2125, %v2141
          %v2158 = vadd.f32 %v2126, %v2142
          %v2159 = vadd.f32 %v2127, %v2143
          %v2160 = vmul.f32 %v1852, %v2144
          %v2161 = vmul.f32 %v1854, %v2145
          %v2162 = vmul.f32 %v1856, %v2146
          %v2163 = vmul.f32 %v1858, %v2147
          %v2164 = vmul.f32 %v1860, %v2148
          %v2165 = vmul.f32 %v1862, %v2149
          %v2166 = vmul.f32 %v1864, %v2150
          %v2167 = vmul.f32 %v1866, %v2151
          %v2168 = vmul.f32 %v1868, %v2152
          %v2169 = vmul.f32 %v1870, %v2153
          %v2170 = vmul.f32 %v1872, %v2154
          %v2171 = vmul.f32 %v1874, %v2155
          %v2172 = vmul.f32 %v1876, %v2156
          %v2173 = vmul.f32 %v1878, %v2157
          %v2174 = vmul.f32 %v1880, %v2158
          %v2175 = vmul.f32 %v1882, %v2159
          %v2176 = vmul.f32 %v1706, %v2160
          %v2177 = vmul.f32 %v1707, %v2161
          %v2178 = vmul.f32 %v1708, %v2162
          %v2179 = vmul.f32 %v1709, %v2163
          %v2180 = vmul.f32 %v1710, %v2164
          %v2181 = vmul.f32 %v1711, %v2165
          %v2182 = vmul.f32 %v1712, %v2166
          %v2183 = vmul.f32 %v1713, %v2167
          %v2184 = vmul.f32 %v1714, %v2168
          %v2185 = vmul.f32 %v1715, %v2169
          %v2186 = vmul.f32 %v1716, %v2170
          %v2187 = vmul.f32 %v1717, %v2171
          %v2188 = vmul.f32 %v1718, %v2172
          %v2189 = vmul.f32 %v1719, %v2173
          %v2190 = vmul.f32 %v1720, %v2174
          %v2191 = vmul.f32 %v1721, %v2175
          %v2192 = vadd.f32 %v1803, %v2176
          %v2193 = vadd.f32 %v1804, %v2177
          %v2194 = vadd.f32 %v1805, %v2178
          %v2195 = vadd.f32 %v1806, %v2179
          %v2196 = vadd.f32 %v1807, %v2180
          %v2197 = vadd.f32 %v1808, %v2181
          %v2198 = vadd.f32 %v1809, %v2182
          %v2199 = vadd.f32 %v1810, %v2183
          %v2200 = vadd.f32 %v1811, %v2184
          %v2201 = vadd.f32 %v1812, %v2185
          %v2202 = vadd.f32 %v1813, %v2186
          %v2203 = vadd.f32 %v1814, %v2187
          %v2204 = vadd.f32 %v1815, %v2188
          %v2205 = vadd.f32 %v1816, %v2189
          %v2206 = vadd.f32 %v1817, %v2190
          %v2207 = vadd.f32 %v1818, %v2191
          %2208 = vst [vmem:[%s309] sm:$0xff] %v2192
          %2209 = vst [vmem:[%s309 + $0x8] sm:$0xff] %v2193
          %2210 = vst [vmem:[%s309 + $0x10] sm:$0xff] %v2194
          %2211 = vst [vmem:[%s309 + $0x18] sm:$0xff] %v2195
          %2212 = vst [vmem:[%s309 + $0x20] sm:$0xff] %v2196
          %2213 = vst [vmem:[%s309 + $0x28] sm:$0xff] %v2197
          %2214 = vst [vmem:[%s309 + $0x30] sm:$0xff] %v2198
          %2215 = vst [vmem:[%s309 + $0x38] sm:$0xff] %v2199
          %2216 = vst [vmem:[%s309 + $0x40] sm:$0xff] %v2200
          %2217 = vst [vmem:[%s309 + $0x48] sm:$0xff] %v2201
          %2218 = vst [vmem:[%s309 + $0x50] sm:$0xff] %v2202
          %2219 = vst [vmem:[%s309 + $0x58] sm:$0xff] %v2203
          %2220 = vst [vmem:[%s309 + $0x60] sm:$0xff] %v2204
          %2221 = vst [vmem:[%s309 + $0x68] sm:$0xff] %v2205
          %2222 = vst [vmem:[%s309 + $0x70] sm:$0xff] %v2206
          %2223 = vst [vmem:[%s309 + $0x78] sm:$0xff] %v2207
        $region56: #{tpu_custom_call.1} parent=31 // pred_fallthru
          _
        %s2224 = sand.u32 %s145, 1
        %s2225 = scalar_lea.sflag [#allocation8], %s2224
        %s2226 = sand.u32 %s145, 1
        %s2227 = smul.addr %s2226, 128
        %s2228 = scalar_lea.vmem [#allocation12], %s2227
        // Predicated region
        $region57: #{tpu_custom_call.1} parent=31 // pred_check
          %p2229 = pneg %p155
        $region58: #{tpu_custom_call.1} parent=31 // pred_check_branch
          %2231 = sbr.rel (%p2229) target = $region60
        $region59: #{tpu_custom_call.1} parent=31 // pred_region
          %s2232 = smul.u32 16, %s37
          %s2234 = ssub.s32 2048, 2048
          %2235 = vsyncadd %s2225, %s2234
          %s2236 = smul.addr %s2232, 128
          %s2237 = scalar_lea.hbm %s5, %s2236
          %s2238 = sshll.u32 %s2228, 4
          %s2239 = int_to_ptr.vmem [resolvable:$true] %s2238
          %2244 = dma.vmem_to_hbm [thread:$0]  %s2239, 2048, %s2237, %s2225, 128, 128, 8
        $region60: #{tpu_custom_call.1} parent=31 // pred_fallthru
          _
      $region32: #{tpu_custom_call.1} parent=5 // pred_fallthru
        _
      %p2245 = scmp.le.s32.totalorder 2, %s28
      // Predicated region
      $region61: #{tpu_custom_call.1} parent=5 // pred_check
        %p2246 = pneg %p2245
      $region62: #{tpu_custom_call.1} parent=5 // pred_check_branch
        %2248 = sbr.rel (%p2246) target = $region64
      $region63: #{tpu_custom_call.1} parent=5 // pred_region
        %s2249 = ssub.s32 %s28, 2
        // Predicated region
        $region65: #{tpu_custom_call.1} parent=63 // pred_check
          %p2250 = pneg %p161
        $region66: #{tpu_custom_call.1} parent=63 // pred_check_branch
          %2252 = sbr.rel (%p2250) target = $region68
        $region67: #{tpu_custom_call.1} parent=63 // pred_region
          %s2253 = sand.u32 %s146, 1
          %s2254 = scalar_lea.sflag [#allocation8], %s2253
          %s2255 = sand.u32 %s146, 1
          %s2256 = smul.addr %s2255, 128
          %s2257 = scalar_lea.vmem [#allocation12], %s2256
          %2258 = dma.done %s2254, 2048
        $region68: #{tpu_custom_call.1} parent=63 // pred_fallthru
          _
      $region64: #{tpu_custom_call.1} parent=5 // pred_fallthru
        _
    $region6: #{tpu_custom_call.1} parent=1 // loop_footer
      %s32 = sadd.s32 1, %s28
    $region7: #{tpu_custom_call.1} parent=1 // loop_footer_branch
      %27 = sbr.rel target = $region3
    $region8: #{tpu_custom_call.1} parent=1 // loop_exit
      _
    %2259 = vsyncpa [#allocation7], 1
    %s2260 = scalar_lea.sflag [#allocation7], 1
    %2261 = vsyncpa %s2260, 1
    %2262 = vsyncpa [#allocation10], 1
    %s2263 = scalar_lea.sflag [#allocation10], 1
    %2264 = vsyncpa %s2263, 1
    %2265 = vsyncpa [#allocation8], 1
    %s2266 = scalar_lea.sflag [#allocation8], 1
    %2267 = vsyncpa %s2266, 1

</llo_original>
